<compile_context>
chip_gen: v5e
topology: v5e:2x2
jax: 0.10.0
libtpu: 0.0.40
codegen_flags: <defaults>
</compile_context>

<pallas_src>
import functools

import jax
import jax.numpy as jnp
from jax import lax
from jax.experimental import pallas as pl
from jax.experimental.pallas import tpu as pltpu


def _bottleneck_kernel(NB, H, W, Wp_a,
                       x_ref, mask_ref, w1_ref, w2_ref, w3_ref,
                       b1_ref, b2_ref, b3_ref, o_ref):
    R_a = (H + 2) * Wp_a           # rows per image on the padded/aligned grid
    NBR = NB * R_a                 # rows handled per grid step
    P = w1_ref.shape[1]            # bottleneck width ("planes")
    Cin = x_ref.shape[1]
    Cout = w3_ref.shape[1]

    xb = x_ref[...]                                           # (NBR, Cin) bf16

    # conv1 (1x1) with bn1/bn2 folded into the weight, + bias + ReLU, then
    # zero the spatial padding ring (bias/ReLU polluted it) so conv2 sees
    # proper zero padding.
    h1 = jnp.dot(xb, w1_ref[...], preferred_element_type=jnp.float32)
    h1 = jnp.maximum(h1 + b1_ref[...], 0.0)                   # (NBR, P) f32
    if NB == 1:
        h1 = h1 * mask_ref[...]
    else:
        h1 = (h1.reshape(NB, R_a, P)
              * mask_ref[...].reshape(1, R_a, 1)).reshape(NBR, P)

    # conv2 (3x3, stride 1, pad 1) with bn3 folded.  Width taps: rolled copies
    # of h1 concatenated along channels (K = 3P).  Height taps: +-Wp_a rolls
    # of the wide operand.  Wrap-around rows only feed padding-ring outputs
    # that are sliced away in the wrapper.  Rolls stay in f32 (safe layouts);
    # bf16 only at the MXU operands.
    wide0 = jnp.concatenate(
        [pltpu.roll(h1, shift=1, axis=0),          # width tap j-1
         h1,                                       # width tap j
         pltpu.roll(h1, shift=NBR - 1, axis=0)],   # width tap j+1  (== -1)
        axis=-1)                                   # (NBR, 3P) f32
    acc = jnp.dot(
        pltpu.roll(wide0, shift=Wp_a, axis=0).astype(jnp.bfloat16),
        w2_ref[0], preferred_element_type=jnp.float32)         # height tap i-1
    acc = acc + jnp.dot(
        wide0.astype(jnp.bfloat16),
        w2_ref[1], preferred_element_type=jnp.float32)         # height tap i
    acc = acc + jnp.dot(
        pltpu.roll(wide0, shift=NBR - Wp_a, axis=0).astype(jnp.bfloat16),
        w2_ref[2], preferred_element_type=jnp.float32)         # height tap i+1
    h2 = jnp.maximum(acc + b2_ref[...], 0.0)

    # conv3 (1x1) with bn4 * prob folded, plus the channel-zero-padded
    # shortcut added in registers (f32, exact up to bf16 rounding of x).
    h3 = jnp.dot(h2.astype(jnp.bfloat16), w3_ref[...],
                 preferred_element_type=jnp.float32) + b3_ref[...]
    xf = xb.astype(jnp.float32)
    if Cout == Cin:
        h3 = h3 + xf
    elif Cin % 128 == 0 and Cout % 128 == 0:
        # Lane-aligned: add into the first Cin lanes only (no zero temp).
        h3 = lax.dynamic_update_slice(h3, h3[:, :Cin] + xf, (0, 0))
    else:
        h3 = h3 + jnp.concatenate(
            [xf, jnp.zeros((NBR, Cout - Cin), jnp.float32)], axis=-1)

    # One aligned block store per image: the H interior padded rows (full
    # Wp_a width); left/right pad columns are stripped in the wrapper.
    HW = H * Wp_a
    for b in range(NB):
        src = b * R_a + Wp_a                       # multiple of 8 sublanes
        o_ref[b * HW:(b + 1) * HW, :] = h3[src:src + HW, :]


def _round_up(x, m):
    return ((x + m - 1) // m) * m


def bottleneck_forward(x_nchw, params, prob=1.0, nb=None):
    # TODO(synk): stride != 1 (ZeroPad2d((0,1,0,1)) + stride-2 conv) and a
    # non-None `downsample` module are not implemented (PyTorch defaults used).
    N, Cin, H, W = x_nchw.shape
    w1_oihw, w2_oihw, w3_oihw = params["w1_oihw"], params["w2_oihw"], params["w3_oihw"]
    P = w1_oihw.shape[0]
    Cout = w3_oihw.shape[0]
    Hp = H + 2
    Wp_a = _round_up(W + 2, 8)              # sublane-aligned padded row stride
    if (Hp * Wp_a) % 16:                    # keep bf16 (16,128) tiling happy
        Wp_a = _round_up(W + 2, 16)
    R_a = Hp * Wp_a

    def fold_bn(g, b, m, v, eps=1e-5):
        s = g / jnp.sqrt(v + eps)
        return s, b - m * s

    s1, c1 = fold_bn(*params["bn1"])
    s2, c2 = fold_bn(*params["bn2"])
    s3, c3 = fold_bn(*params["bn3"])
    s4, c4 = fold_bn(*params["bn4"])

    # Fold all BN affines (and the stochastic-depth prob) into conv weights.
    w1 = jnp.transpose(w1_oihw[:, :, 0, 0], (1, 0))                 # (Cin, P)
    w1f = (s1[:, None] * w1 * s2[None, :]).astype(jnp.bfloat16)
    bias1 = ((c1 @ w1) * s2 + c2).reshape(1, P).astype(jnp.float32)

    w2 = jnp.transpose(w2_oihw, (2, 3, 1, 0))                       # (kh,kw,in,out)
    w2f = (w2 * s3[None, None, None, :]).reshape(3, 3 * P, P).astype(jnp.bfloat16)
    bias2 = c3.reshape(1, P).astype(jnp.float32)

    w3 = jnp.transpose(w3_oihw[:, :, 0, 0], (1, 0))                 # (P, Cout)
    w3f = (w3 * (s4 * prob)[None, :]).astype(jnp.bfloat16)
    bias3 = (c4 * prob).reshape(1, Cout).astype(jnp.float32)

    # ---- VMEM-aware choice of images per grid step --------------------------
    vmem_cap = 64 * 1024 * 1024                     # v7x-safe default
    try:
        vmem_cap = int(getattr(pltpu.get_tpu_info(), "vmem_capacity_bytes",
                               vmem_cap))
    except Exception:
        pass
    vmem_limit = min((vmem_cap * 3) // 4, 100 * 1024 * 1024)
    budget = (vmem_limit * 9) // 20                 # ~45% for activations

    r128 = lambda c: _round_up(c, 128)              # lane-padded channel width
    # Grid-invariant blocks (weights / biases / mask), double-buffered.
    fixed = (2 * 2 * (Cin * P + 9 * P * P + P * Cout)   # bf16 weights
             + 2 * 4 * 3 * 128                           # biases (lane-padded)
             + 2 * 4 * R_a * 128)                        # (R_a, 1) mask block
    # Per-image footprint: pipelined in/out blocks + live in-kernel temps
    # (x upcast, h1, wide0 + two rolled copies + bf16 casts, acc/h2,
    #  h3 + shortcut temp), all lane-padded.
    per_img = (2 * 2 * R_a * r128(Cin)                   # x block, bf16, x2 buf
               + 2 * 4 * H * Wp_a * r128(Cout)           # out block, f32, x2 buf
               + R_a * (8 * r128(Cin)
                        + 14 * r128(P)
                        + 16 * r128(3 * P)
                        + 8 * r128(Cout)))
    if nb is None:
        cap = max(1, min(N, (budget - fixed) // max(per_img, 1)))
        divisors = [d for d in range(1, int(cap) + 1) if N % d == 0]
        nb = divisors[-1]
        if N >= 2:
            multi = [d for d in divisors if N // d >= 2]   # >=2 steps: megacore
            if multi:
                even = [d for d in multi if (N // d) % 2 == 0]
                nb = (even or multi)[-1]
    else:
        while N % nb:
            nb -= 1
    NB = int(nb)
    steps = N // NB

    x_nhwc = jnp.transpose(x_nchw, (0, 2, 3, 1))
    x_flat = jnp.pad(
        x_nhwc, ((0, 0), (1, 1), (1, Wp_a - W - 1), (0, 0))
    ).reshape(N * R_a, Cin).astype(jnp.bfloat16)

    ii = jnp.arange(Hp)[:, None]
    jj = jnp.arange(Wp_a)[None, :]
    mask = ((ii >= 1) & (ii <= H) & (jj >= 1) & (jj <= W)
            ).astype(jnp.float32).reshape(R_a, 1)

    kernel = functools.partial(_bottleneck_kernel, NB, H, W, Wp_a)

    flops = 2 * N * R_a * (Cin * P + 9 * P * P + P * Cout)
    bytes_accessed = (
        x_flat.size * 2
        + (N * H * Wp_a * Cout + mask.size
           + bias1.size + bias2.size + bias3.size) * 4
        + (w1f.size + w2f.size + w3f.size) * 2)

    out_flat = pl.pallas_call(
        kernel,
        out_shape=jax.ShapeDtypeStruct((N * H * Wp_a, Cout), jnp.float32),
        grid=(steps,),
        in_specs=[
            pl.BlockSpec((NB * R_a, Cin), lambda n: (n, 0)),
            pl.BlockSpec((R_a, 1), lambda n: (0, 0)),
            pl.BlockSpec((Cin, P), lambda n: (0, 0)),
            pl.BlockSpec((3, 3 * P, P), lambda n: (0, 0, 0)),
            pl.BlockSpec((P, Cout), lambda n: (0, 0)),
            pl.BlockSpec((1, P), lambda n: (0, 0)),
            pl.BlockSpec((1, P), lambda n: (0, 0)),
            pl.BlockSpec((1, Cout), lambda n: (0, 0)),
        ],
        out_specs=pl.BlockSpec((NB * H * Wp_a, Cout), lambda n: (n, 0)),
        compiler_params=pltpu.CompilerParams(
            dimension_semantics=("parallel",),
            vmem_limit_bytes=int(vmem_limit)),
        cost_estimate=pl.CostEstimate(
            flops=int(flops), transcendentals=0,
            bytes_accessed=int(bytes_accessed)),
    )(x_flat, mask, w1f, w2f, w3f, bias1, bias2, bias3)

    # TODO(synk): for Cout < 128 a lane-dense (packed) output layout would turn
    # the masked partial-lane stores into full-width vst's.
    out = out_flat.reshape(N, H, Wp_a, Cout)[:, :, 1:W + 1, :]
    return jnp.transpose(out, (0, 3, 1, 2))          # back to NCHW


def init_params(key, inplanes, planes):
    Cout = planes * 4
    ks = jax.random.split(key, 7)

    def conv_w(k, shape, fan_in):
        return jax.random.normal(k, shape, jnp.float32) / jnp.sqrt(float(fan_in))

    def bn_params(k, c):
        k1, k2, k3, k4 = jax.random.split(k, 4)
        gamma = jax.random.uniform(k1, (c,), jnp.float32, 0.5, 1.5)
        beta = jax.random.normal(k2, (c,), jnp.float32) * 0.1
        mean = jax.random.normal(k3, (c,), jnp.float32) * 0.1
        var = jax.random.uniform(k4, (c,), jnp.float32, 0.5, 1.5)
        return (gamma, beta, mean, var)

    return {
        "w1_oihw": conv_w(ks[0], (planes, inplanes, 1, 1), inplanes),
        "w2_oihw": conv_w(ks[1], (planes, planes, 3, 3), planes * 9),
        "w3_oihw": conv_w(ks[2], (Cout, planes, 1, 1), planes),
        "bn1": bn_params(ks[3], inplanes),
        "bn2": bn_params(ks[4], planes),
        "bn3": bn_params(ks[5], planes),
        "bn4": bn_params(ks[6], Cout),
    }


def reference_forward(x, pt, prob):
    def bn(t, p):
        g, b, m, v = p
        shp = (1, -1, 1, 1)
        return ((t - m.reshape(shp)) / jnp.sqrt(v.reshape(shp) + 1e-5)
                * g.reshape(shp) + b.reshape(shp))

    dn = ("NCHW", "OIHW", "NCHW")
    hi = lax.Precision.HIGHEST
    out = bn(x, pt["bn1"])
    out = lax.conv_general_dilated(out, pt["w1_oihw"], (1, 1), "VALID",
                                   dimension_numbers=dn, precision=hi)
    out = jax.nn.relu(bn(out, pt["bn2"]))
    out = lax.conv_general_dilated(out, pt["w2_oihw"], (1, 1), ((1, 1), (1, 1)),
                                   dimension_numbers=dn, precision=hi)
    out = jax.nn.relu(bn(out, pt["bn3"]))
    out = lax.conv_general_dilated(out, pt["w3_oihw"], (1, 1), "VALID",
                                   dimension_numbers=dn, precision=hi)
    out = bn(out, pt["bn4"]) * prob
    pad_c = out.shape[1] - x.shape[1]
    shortcut = jnp.pad(x, ((0, 0), (0, pad_c), (0, 0), (0, 0)))
    return out + shortcut


if __name__ == "__main__":
    key = jax.random.PRNGKey(0)
    kx, kp = jax.random.split(key)

    N, inplanes, H, W = 2, 4, 16, 16
    planes = 4
    prob = 0.9

    x = jax.random.normal(kx, (N, inplanes, H, W), jnp.float32)
    pt = init_params(kp, inplanes, planes)

    out = bottleneck_forward(x, pt, prob=prob)
    out = jax.block_until_ready(out)

    ref = reference_forward(x, pt, prob)
    assert out.shape == ref.shape == (N, planes * 4, H, W)

    # Kernel uses bf16 MXU inputs (f32 accumulation) across three chained
    # matmuls and a bf16-streamed shortcut, so the tolerance is scaled to the
    # output magnitude.
    max_err = float(jnp.max(jnp.abs(out - ref)))
    scale = float(jnp.max(jnp.abs(ref)))
    if not (max_err < 3e-2 * (1.0 + scale)):
        raise SystemExit(f"mismatch: max abs err = {max_err} (scale {scale})")
    print("KERNEL_OK")
</pallas_src>

<mosaic_0001>
module attributes {stable_mosaic.version = 11 : i64} {
  func.func @_bottleneck_kernel(%arg0: i32, %arg1: memref<432x4xbf16, #tpu.memory_space<vmem>>, %arg2: memref<432x1xf32, #tpu.memory_space<vmem>>, %arg3: memref<4x4xbf16, #tpu.memory_space<vmem>>, %arg4: memref<3x12x4xbf16, #tpu.memory_space<vmem>>, %arg5: memref<4x16xbf16, #tpu.memory_space<vmem>>, %arg6: memref<1x4xf32, #tpu.memory_space<vmem>>, %arg7: memref<1x4xf32, #tpu.memory_space<vmem>>, %arg8: memref<1x16xf32, #tpu.memory_space<vmem>>, %arg9: memref<384x16xf32, #tpu.memory_space<vmem>>) attributes {dimension_semantics = [#tpu.dimension_semantics<parallel>], iteration_bounds = array<i64: 2>, scalar_prefetch = 0 : i64, scratch_operands = 0 : i64, tpu.core_type = #tpu.core_type<tc>, window_params = [{transform_indices = @transform_0, window_bounds = array<i64: 432, 4>}, {pipeline_mode = #tpu.pipeline_mode<synchronous>, transform_indices = @transform_1, window_bounds = array<i64: 432, 1>}, {pipeline_mode = #tpu.pipeline_mode<synchronous>, transform_indices = @transform_2, window_bounds = array<i64: 4, 4>}, {pipeline_mode = #tpu.pipeline_mode<synchronous>, transform_indices = @transform_3, window_bounds = array<i64: 3, 12, 4>}, {pipeline_mode = #tpu.pipeline_mode<synchronous>, transform_indices = @transform_4, window_bounds = array<i64: 4, 16>}, {pipeline_mode = #tpu.pipeline_mode<synchronous>, transform_indices = @transform_5, window_bounds = array<i64: 1, 4>}, {pipeline_mode = #tpu.pipeline_mode<synchronous>, transform_indices = @transform_6, window_bounds = array<i64: 1, 4>}, {pipeline_mode = #tpu.pipeline_mode<synchronous>, transform_indices = @transform_7, window_bounds = array<i64: 1, 16>}, {transform_indices = @transform_8, window_bounds = array<i64: 384, 16>}]} {
    %c0 = arith.constant 0 : index
    %c0_0 = arith.constant 0 : index
    %0 = vector.load %arg1[%c0, %c0_0] : memref<432x4xbf16, #tpu.memory_space<vmem>>, vector<432x4xbf16>
    %c0_1 = arith.constant 0 : index
    %c0_2 = arith.constant 0 : index
    %1 = vector.load %arg3[%c0_1, %c0_2] : memref<4x4xbf16, #tpu.memory_space<vmem>>, vector<4x4xbf16>
    %cst = arith.constant dense<0.000000e+00> : vector<432x4xf32>
    %2 = tpu.matmul %0, %1, %cst {dimension_numbers = #tpu.dot_dimension_numbers<[1], [0], [0], [1], [0, 0, 1, 1], [], []>} : vector<432x4xbf16>, vector<4x4xbf16>, vector<432x4xf32> -> vector<432x4xf32>
    %c0_3 = arith.constant 0 : index
    %c0_4 = arith.constant 0 : index
    %3 = vector.load %arg6[%c0_3, %c0_4] : memref<1x4xf32, #tpu.memory_space<vmem>>, vector<1x4xf32>
    %4 = vector.broadcast %3 : vector<1x4xf32> to vector<432x4xf32>
    %5 = arith.addf %2, %4 : vector<432x4xf32>
    %cst_5 = arith.constant 0.000000e+00 : f32
    %6 = vector.broadcast %cst_5 : f32 to vector<432x4xf32>
    %7 = arith.maximumf %5, %6 : vector<432x4xf32>
    %c0_6 = arith.constant 0 : index
    %c0_7 = arith.constant 0 : index
    %8 = vector.load %arg2[%c0_6, %c0_7] : memref<432x1xf32, #tpu.memory_space<vmem>>, vector<432x1xf32>
    %9 = vector.broadcast %8 : vector<432x1xf32> to vector<432x4xf32>
    %10 = arith.mulf %7, %9 : vector<432x4xf32>
    %c1_i32 = arith.constant 1 : i32
    %11 = tpu.dynamic_rotate %10 by %c1_i32 dim 0 : vector<432x4xf32>, i32 -> vector<432x4xf32>
    %c431_i32 = arith.constant 431 : i32
    %12 = tpu.dynamic_rotate %10 by %c431_i32 dim 0 : vector<432x4xf32>, i32 -> vector<432x4xf32>
    %13 = tpu.concatenate %11, %10, %12 in 1 : vector<432x4xf32>, vector<432x4xf32>, vector<432x4xf32> -> vector<432x12xf32>
    %c24_i32 = arith.constant 24 : i32
    %14 = tpu.dynamic_rotate %13 by %c24_i32 dim 0 : vector<432x12xf32>, i32 -> vector<432x12xf32>
    %15 = arith.truncf %14 : vector<432x12xf32> to vector<432x12xbf16>
    %c0_8 = arith.constant 0 : index
    %c0_9 = arith.constant 0 : index
    %c0_10 = arith.constant 0 : index
    %16 = vector.load %arg4[%c0_8, %c0_9, %c0_10] : memref<3x12x4xbf16, #tpu.memory_space<vmem>>, vector<1x12x4xbf16>
    %17 = vector.shape_cast %16 : vector<1x12x4xbf16> to vector<12x4xbf16>
    %cst_11 = arith.constant dense<0.000000e+00> : vector<432x4xf32>
    %18 = tpu.matmul %15, %17, %cst_11 {dimension_numbers = #tpu.dot_dimension_numbers<[1], [0], [0], [1], [0, 0, 1, 1], [], []>} : vector<432x12xbf16>, vector<12x4xbf16>, vector<432x4xf32> -> vector<432x4xf32>
    %19 = arith.truncf %13 : vector<432x12xf32> to vector<432x12xbf16>
    %c1 = arith.constant 1 : index
    %c0_12 = arith.constant 0 : index
    %c0_13 = arith.constant 0 : index
    %20 = vector.load %arg4[%c1, %c0_12, %c0_13] : memref<3x12x4xbf16, #tpu.memory_space<vmem>>, vector<1x12x4xbf16>
    %21 = vector.shape_cast %20 : vector<1x12x4xbf16> to vector<12x4xbf16>
    %cst_14 = arith.constant dense<0.000000e+00> : vector<432x4xf32>
    %22 = tpu.matmul %19, %21, %cst_14 {dimension_numbers = #tpu.dot_dimension_numbers<[1], [0], [0], [1], [0, 0, 1, 1], [], []>} : vector<432x12xbf16>, vector<12x4xbf16>, vector<432x4xf32> -> vector<432x4xf32>
    %23 = arith.addf %18, %22 : vector<432x4xf32>
    %c408_i32 = arith.constant 408 : i32
    %24 = tpu.dynamic_rotate %13 by %c408_i32 dim 0 : vector<432x12xf32>, i32 -> vector<432x12xf32>
    %25 = arith.truncf %24 : vector<432x12xf32> to vector<432x12xbf16>
    %c2 = arith.constant 2 : index
    %c0_15 = arith.constant 0 : index
    %c0_16 = arith.constant 0 : index
    %26 = vector.load %arg4[%c2, %c0_15, %c0_16] : memref<3x12x4xbf16, #tpu.memory_space<vmem>>, vector<1x12x4xbf16>
    %27 = vector.shape_cast %26 : vector<1x12x4xbf16> to vector<12x4xbf16>
    %cst_17 = arith.constant dense<0.000000e+00> : vector<432x4xf32>
    %28 = tpu.matmul %25, %27, %cst_17 {dimension_numbers = #tpu.dot_dimension_numbers<[1], [0], [0], [1], [0, 0, 1, 1], [], []>} : vector<432x12xbf16>, vector<12x4xbf16>, vector<432x4xf32> -> vector<432x4xf32>
    %29 = arith.addf %23, %28 : vector<432x4xf32>
    %c0_18 = arith.constant 0 : index
    %c0_19 = arith.constant 0 : index
    %30 = vector.load %arg7[%c0_18, %c0_19] : memref<1x4xf32, #tpu.memory_space<vmem>>, vector<1x4xf32>
    %31 = vector.broadcast %30 : vector<1x4xf32> to vector<432x4xf32>
    %32 = arith.addf %29, %31 : vector<432x4xf32>
    %cst_20 = arith.constant 0.000000e+00 : f32
    %33 = vector.broadcast %cst_20 : f32 to vector<432x4xf32>
    %34 = arith.maximumf %32, %33 : vector<432x4xf32>
    %35 = arith.truncf %34 : vector<432x4xf32> to vector<432x4xbf16>
    %c0_21 = arith.constant 0 : index
    %c0_22 = arith.constant 0 : index
    %36 = vector.load %arg5[%c0_21, %c0_22] : memref<4x16xbf16, #tpu.memory_space<vmem>>, vector<4x16xbf16>
    %cst_23 = arith.constant dense<0.000000e+00> : vector<432x16xf32>
    %37 = tpu.matmul %35, %36, %cst_23 {dimension_numbers = #tpu.dot_dimension_numbers<[1], [0], [0], [1], [0, 0, 1, 1], [], []>} : vector<432x4xbf16>, vector<4x16xbf16>, vector<432x16xf32> -> vector<432x16xf32>
    %c0_24 = arith.constant 0 : index
    %c0_25 = arith.constant 0 : index
    %38 = vector.load %arg8[%c0_24, %c0_25] : memref<1x16xf32, #tpu.memory_space<vmem>>, vector<1x16xf32>
    %39 = vector.broadcast %38 : vector<1x16xf32> to vector<432x16xf32>
    %40 = arith.addf %37, %39 : vector<432x16xf32>
    %41 = arith.extf %0 : vector<432x4xbf16> to vector<432x4xf32>
    %cst_26 = arith.constant 0.000000e+00 : f32
    %42 = vector.broadcast %cst_26 : f32 to vector<432x12xf32>
    %43 = tpu.concatenate %41, %42 in 1 : vector<432x4xf32>, vector<432x12xf32> -> vector<432x16xf32>
    %44 = arith.addf %40, %43 : vector<432x16xf32>
    %45 = vector.extract_strided_slice %44 {offsets = [24, 0], sizes = [384, 16], strides = [1, 1]} : vector<432x16xf32> to vector<384x16xf32>
    %c0_27 = arith.constant 0 : index
    %c0_28 = arith.constant 0 : index
    %46 = vector.load %arg9[%c0_27, %c0_28] : memref<384x16xf32, #tpu.memory_space<vmem>>, vector<384x16xf32>
    tpu.vector_store %arg9[%c0_27, %c0_28], %45 {strides = array<i32>} : memref<384x16xf32, #tpu.memory_space<vmem>>, vector<384x16xf32>,
    return
  }
  func.func @transform_0(%arg0: i32) -> (i32, i32) {
    %c0_i32 = arith.constant 0 : i32
    %c0_i32_0 = arith.constant 0 : i32
    return %arg0, %c0_i32 : i32, i32
  }
  func.func @transform_1(%arg0: i32) -> (i32, i32) {
    %c0_i32 = arith.constant 0 : i32
    %c0_i32_0 = arith.constant 0 : i32
    %c0_i32_1 = arith.constant 0 : i32
    return %c0_i32, %c0_i32_0 : i32, i32
  }
  func.func @transform_2(%arg0: i32) -> (i32, i32) {
    %c0_i32 = arith.constant 0 : i32
    %c0_i32_0 = arith.constant 0 : i32
    %c0_i32_1 = arith.constant 0 : i32
    return %c0_i32, %c0_i32_0 : i32, i32
  }
  func.func @transform_3(%arg0: i32) -> (i32, i32, i32) {
    %c0_i32 = arith.constant 0 : i32
    %c0_i32_0 = arith.constant 0 : i32
    %c0_i32_1 = arith.constant 0 : i32
    %c0_i32_2 = arith.constant 0 : i32
    return %c0_i32, %c0_i32_0, %c0_i32_1 : i32, i32, i32
  }
  func.func @transform_4(%arg0: i32) -> (i32, i32) {
    %c0_i32 = arith.constant 0 : i32
    %c0_i32_0 = arith.constant 0 : i32
    %c0_i32_1 = arith.constant 0 : i32
    return %c0_i32, %c0_i32_0 : i32, i32
  }
  func.func @transform_5(%arg0: i32) -> (i32, i32) {
    %c0_i32 = arith.constant 0 : i32
    %c0_i32_0 = arith.constant 0 : i32
    %c0_i32_1 = arith.constant 0 : i32
    return %c0_i32, %c0_i32_0 : i32, i32
  }
  func.func @transform_6(%arg0: i32) -> (i32, i32) {
    %c0_i32 = arith.constant 0 : i32
    %c0_i32_0 = arith.constant 0 : i32
    %c0_i32_1 = arith.constant 0 : i32
    return %c0_i32, %c0_i32_0 : i32, i32
  }
  func.func @transform_7(%arg0: i32) -> (i32, i32) {
    %c0_i32 = arith.constant 0 : i32
    %c0_i32_0 = arith.constant 0 : i32
    %c0_i32_1 = arith.constant 0 : i32
    return %c0_i32, %c0_i32_0 : i32, i32
  }
  func.func @transform_8(%arg0: i32) -> (i32, i32) {
    %c0_i32 = arith.constant 0 : i32
    %c0_i32_0 = arith.constant 0 : i32
    return %arg0, %c0_i32 : i32, i32
  }
}

</mosaic_0001>

<llo_original>
// kernel: tpu_custom_call.1
$region0: #{tpu_custom_call.1}
  #allocation0 [shape = 'u32[]', space=smem, size = 0x4, offset = 0x4, fixed_abs, tag = 'smem constant byte address 0x4 - core index']
  #allocation1 [shape = 'u32[72,128]{1,0:T(1,128)}', space=vmem, size = 0x9000, scoped, tag = 'internal scratch']
  %s0 = inlined_call_operand.vmem [shape: bf16[864,4], index: 0, kind: input, shape index: {}]
  %s1 = inlined_call_operand.vmem [shape: f32[432,1], index: 1, kind: input, shape index: {}]
  %s2 = inlined_call_operand.vmem [shape: bf16[4,4], index: 2, kind: input, shape index: {}]
  %s3 = inlined_call_operand.vmem [shape: bf16[3,12,4], index: 3, kind: input, shape index: {}]
  %s4 = inlined_call_operand.vmem [shape: bf16[4,16], index: 4, kind: input, shape index: {}]
  %s5 = inlined_call_operand.vmem [shape: f32[1,4], index: 5, kind: input, shape index: {}]
  %s6 = inlined_call_operand.vmem [shape: f32[1,4], index: 6, kind: input, shape index: {}]
  %s7 = inlined_call_operand.vmem [shape: f32[1,16], index: 7, kind: input, shape index: {}]
  %s8 = inlined_call_operand.vmem [shape: f32[768,16], index: 8, kind: output, shape index: {}]
  %s9 = sld [smem:[#allocation0]]
  $region65: #{tpu_custom_call.1} parent=0
    _
  %s11 = ssub.s32 1, %s9
  %s12 = scalar_select 0, %s11, %s9
  loop: start=0, step=1, limit=4
  $region2: #{tpu_custom_call.1} parent=0 // loop_pre_header
    _
  $region3: #{tpu_custom_call.1} parent=0 // loop_header
    %s14 = sphi 0, %s18
    %p15 = scmp.ge.s32.totalorder %s14, 4
    %s24 = sphi 0, %s26
    %s27 = sphi 0, %s24
    %s28 = sphi 0, %s27
    %s44 = sphi 0, %s28
    %s48 = sphi 0, %s48
    %s50 = sphi 0, %s48
    %s51 = sphi 0, %s50
    %s65 = sphi 0, %s51
    %s69 = sphi 0, %s69
    %s71 = sphi 0, %s69
    %s72 = sphi 0, %s71
    %s86 = sphi 0, %s72
    %s90 = sphi 0, %s90
    %s92 = sphi 0, %s90
    %s93 = sphi 0, %s92
    %s107 = sphi 0, %s93
    %s111 = sphi 0, %s111
    %s113 = sphi 0, %s111
    %s114 = sphi 0, %s113
    %s128 = sphi 0, %s114
    %s132 = sphi 0, %s132
    %s134 = sphi 0, %s132
    %s135 = sphi 0, %s134
    %s149 = sphi 0, %s135
    %s153 = sphi 0, %s153
    %s155 = sphi 0, %s153
    %s156 = sphi 0, %s155
    %s170 = sphi 0, %s156
    %s174 = sphi 0, %s174
    %s176 = sphi 0, %s174
    %s177 = sphi 0, %s176
    %s191 = sphi 0, %s177
    %s197 = sphi 0, %s199
    %s200 = sphi 0, %s197
    %s201 = sphi 0, %s200
    %s217 = sphi 0, %s201
  $region4: #{tpu_custom_call.1} parent=0 // loop_header_branch
    %17 = sbr.rel (%p15) target = $region8
  $region5: #{tpu_custom_call.1} parent=0 // loop_body
    %s19 = ssub.s32 %s14, 1
    %s20 = ssub.s32 %s14, 2
    %s21 = sadd.s32 %s14, 1
    %s22 = ssub.s32 %s14, %s21
    %p23 = scmp.eq.s32.totalorder %s22, 0
    %s25 = sadd.s32 %s24, 1
    %s26 = scalar_select %p23, %s24, %s25
    %p29 = pneg %p23
    %p30 = scmp.eq.s32.totalorder %s14, 1
    %p31 = por %p29, %p30
    %p32 = scmp.ne.s32.totalorder %s24, %s27
    %p33 = scmp.eq.s32.totalorder %s14, 0
    %p34 = por %p32, %p33
    %p35 = scmp.ne.s32.totalorder %s24, %s27
    %p36 = scmp.eq.s32.totalorder %s19, 1
    %p37 = por %p35, %p36
    %p38 = scmp.ne.s32.totalorder %s27, %s28
    %p39 = scmp.eq.s32.totalorder %s19, 0
    %p40 = por %p38, %p39
    %p41 = scmp.ne.s32.totalorder %s27, %s28
    %p42 = scmp.eq.s32.totalorder %s20, 1
    %p43 = por %p41, %p42
    %p45 = scmp.ne.s32.totalorder %s28, %s44
    %p46 = scmp.eq.s32.totalorder %s20, 0
    %p47 = por %p45, %p46
    %s49 = sadd.s32 %s48, 1
    %p52 = scmp.eq.s32.totalorder %s14, 1
    %p53 = scmp.ne.s32.totalorder %s48, %s50
    %p54 = scmp.eq.s32.totalorder %s14, 0
    %p55 = por %p53, %p54
    %p56 = scmp.ne.s32.totalorder %s48, %s50
    %p57 = scmp.eq.s32.totalorder %s19, 1
    %p58 = por %p56, %p57
    %p59 = scmp.ne.s32.totalorder %s50, %s51
    %p60 = scmp.eq.s32.totalorder %s19, 0
    %p61 = por %p59, %p60
    %p62 = scmp.ne.s32.totalorder %s50, %s51
    %p63 = scmp.eq.s32.totalorder %s20, 1
    %p64 = por %p62, %p63
    %p66 = scmp.ne.s32.totalorder %s51, %s65
    %p67 = scmp.eq.s32.totalorder %s20, 0
    %p68 = por %p66, %p67
    %s70 = sadd.s32 %s69, 1
    %p73 = scmp.eq.s32.totalorder %s14, 1
    %p74 = scmp.ne.s32.totalorder %s69, %s71
    %p75 = scmp.eq.s32.totalorder %s14, 0
    %p76 = por %p74, %p75
    %p77 = scmp.ne.s32.totalorder %s69, %s71
    %p78 = scmp.eq.s32.totalorder %s19, 1
    %p79 = por %p77, %p78
    %p80 = scmp.ne.s32.totalorder %s71, %s72
    %p81 = scmp.eq.s32.totalorder %s19, 0
    %p82 = por %p80, %p81
    %p83 = scmp.ne.s32.totalorder %s71, %s72
    %p84 = scmp.eq.s32.totalorder %s20, 1
    %p85 = por %p83, %p84
    %p87 = scmp.ne.s32.totalorder %s72, %s86
    %p88 = scmp.eq.s32.totalorder %s20, 0
    %p89 = por %p87, %p88
    %s91 = sadd.s32 %s90, 1
    %p94 = scmp.eq.s32.totalorder %s14, 1
    %p95 = scmp.ne.s32.totalorder %s90, %s92
    %p96 = scmp.eq.s32.totalorder %s14, 0
    %p97 = por %p95, %p96
    %p98 = scmp.ne.s32.totalorder %s90, %s92
    %p99 = scmp.eq.s32.totalorder %s19, 1
    %p100 = por %p98, %p99
    %p101 = scmp.ne.s32.totalorder %s92, %s93
    %p102 = scmp.eq.s32.totalorder %s19, 0
    %p103 = por %p101, %p102
    %p104 = scmp.ne.s32.totalorder %s92, %s93
    %p105 = scmp.eq.s32.totalorder %s20, 1
    %p106 = por %p104, %p105
    %p108 = scmp.ne.s32.totalorder %s93, %s107
    %p109 = scmp.eq.s32.totalorder %s20, 0
    %p110 = por %p108, %p109
    %s112 = sadd.s32 %s111, 1
    %p115 = scmp.eq.s32.totalorder %s14, 1
    %p116 = scmp.ne.s32.totalorder %s111, %s113
    %p117 = scmp.eq.s32.totalorder %s14, 0
    %p118 = por %p116, %p117
    %p119 = scmp.ne.s32.totalorder %s111, %s113
    %p120 = scmp.eq.s32.totalorder %s19, 1
    %p121 = por %p119, %p120
    %p122 = scmp.ne.s32.totalorder %s113, %s114
    %p123 = scmp.eq.s32.totalorder %s19, 0
    %p124 = por %p122, %p123
    %p125 = scmp.ne.s32.totalorder %s113, %s114
    %p126 = scmp.eq.s32.totalorder %s20, 1
    %p127 = por %p125, %p126
    %p129 = scmp.ne.s32.totalorder %s114, %s128
    %p130 = scmp.eq.s32.totalorder %s20, 0
    %p131 = por %p129, %p130
    %s133 = sadd.s32 %s132, 1
    %p136 = scmp.eq.s32.totalorder %s14, 1
    %p137 = scmp.ne.s32.totalorder %s132, %s134
    %p138 = scmp.eq.s32.totalorder %s14, 0
    %p139 = por %p137, %p138
    %p140 = scmp.ne.s32.totalorder %s132, %s134
    %p141 = scmp.eq.s32.totalorder %s19, 1
    %p142 = por %p140, %p141
    %p143 = scmp.ne.s32.totalorder %s134, %s135
    %p144 = scmp.eq.s32.totalorder %s19, 0
    %p145 = por %p143, %p144
    %p146 = scmp.ne.s32.totalorder %s134, %s135
    %p147 = scmp.eq.s32.totalorder %s20, 1
    %p148 = por %p146, %p147
    %p150 = scmp.ne.s32.totalorder %s135, %s149
    %p151 = scmp.eq.s32.totalorder %s20, 0
    %p152 = por %p150, %p151
    %s154 = sadd.s32 %s153, 1
    %p157 = scmp.eq.s32.totalorder %s14, 1
    %p158 = scmp.ne.s32.totalorder %s153, %s155
    %p159 = scmp.eq.s32.totalorder %s14, 0
    %p160 = por %p158, %p159
    %p161 = scmp.ne.s32.totalorder %s153, %s155
    %p162 = scmp.eq.s32.totalorder %s19, 1
    %p163 = por %p161, %p162
    %p164 = scmp.ne.s32.totalorder %s155, %s156
    %p165 = scmp.eq.s32.totalorder %s19, 0
    %p166 = por %p164, %p165
    %p167 = scmp.ne.s32.totalorder %s155, %s156
    %p168 = scmp.eq.s32.totalorder %s20, 1
    %p169 = por %p167, %p168
    %p171 = scmp.ne.s32.totalorder %s156, %s170
    %p172 = scmp.eq.s32.totalorder %s20, 0
    %p173 = por %p171, %p172
    %s175 = sadd.s32 %s174, 1
    %p178 = scmp.eq.s32.totalorder %s14, 1
    %p179 = scmp.ne.s32.totalorder %s174, %s176
    %p180 = scmp.eq.s32.totalorder %s14, 0
    %p181 = por %p179, %p180
    %p182 = scmp.ne.s32.totalorder %s174, %s176
    %p183 = scmp.eq.s32.totalorder %s19, 1
    %p184 = por %p182, %p183
    %p185 = scmp.ne.s32.totalorder %s176, %s177
    %p186 = scmp.eq.s32.totalorder %s19, 0
    %p187 = por %p185, %p186
    %p188 = scmp.ne.s32.totalorder %s176, %s177
    %p189 = scmp.eq.s32.totalorder %s20, 1
    %p190 = por %p188, %p189
    %p192 = scmp.ne.s32.totalorder %s177, %s191
    %p193 = scmp.eq.s32.totalorder %s20, 0
    %p194 = por %p192, %p193
    %s195 = ssub.s32 %s14, %s21
    %p196 = scmp.eq.s32.totalorder %s195, 0
    %s198 = sadd.s32 %s197, 1
    %s199 = scalar_select %p196, %s197, %s198
    %p202 = pneg %p196
    %p203 = scmp.eq.s32.totalorder %s14, 1
    %p204 = por %p202, %p203
    %p205 = scmp.ne.s32.totalorder %s197, %s200
    %p206 = scmp.eq.s32.totalorder %s14, 0
    %p207 = por %p205, %p206
    %p208 = scmp.ne.s32.totalorder %s197, %s200
    %p209 = scmp.eq.s32.totalorder %s19, 1
    %p210 = por %p208, %p209
    %p211 = scmp.ne.s32.totalorder %s200, %s201
    %p212 = scmp.eq.s32.totalorder %s19, 0
    %p213 = por %p211, %p212
    %p214 = scmp.ne.s32.totalorder %s200, %s201
    %p215 = scmp.eq.s32.totalorder %s20, 1
    %p216 = por %p214, %p215
    %p218 = scmp.ne.s32.totalorder %s201, %s217
    %p219 = scmp.eq.s32.totalorder %s20, 0
    %p220 = por %p218, %p219
    %p221 = scmp.le.s32.totalorder 1, %s14
    %p222 = scmp.lt.s32.totalorder %s14, 3
    %p223 = pnand %p221, %p222
    %p224 = pneg %p223
    // Predicated region
    $region9: #{tpu_custom_call.1} parent=5 // pred_check
      _
    $region10: #{tpu_custom_call.1} parent=5 // pred_check_branch
      %226 = sbr.rel (%p223) target = $region12
    $region11: #{tpu_custom_call.1} parent=5 // pred_region
      %s227 = ssub.s32 %s14, 1
      // Predicated region
      $region13: #{tpu_custom_call.1} parent=11 // pred_check
        %p228 = pneg %p61
      $region14: #{tpu_custom_call.1} parent=11 // pred_check_branch
        %230 = sbr.rel (%p228) target = $region16
      $region15: #{tpu_custom_call.1} parent=11 // pred_region
        _
      $region16: #{tpu_custom_call.1} parent=11 // pred_fallthru
        _
      // Predicated region
      $region17: #{tpu_custom_call.1} parent=11 // pred_check
        %p231 = pneg %p82
      $region18: #{tpu_custom_call.1} parent=11 // pred_check_branch
        %233 = sbr.rel (%p231) target = $region20
      $region19: #{tpu_custom_call.1} parent=11 // pred_region
        _
      $region20: #{tpu_custom_call.1} parent=11 // pred_fallthru
        _
      // Predicated region
      $region21: #{tpu_custom_call.1} parent=11 // pred_check
        %p234 = pneg %p103
      $region22: #{tpu_custom_call.1} parent=11 // pred_check_branch
        %236 = sbr.rel (%p234) target = $region24
      $region23: #{tpu_custom_call.1} parent=11 // pred_region
        _
      $region24: #{tpu_custom_call.1} parent=11 // pred_fallthru
        _
      // Predicated region
      $region25: #{tpu_custom_call.1} parent=11 // pred_check
        %p237 = pneg %p124
      $region26: #{tpu_custom_call.1} parent=11 // pred_check_branch
        %239 = sbr.rel (%p237) target = $region28
      $region27: #{tpu_custom_call.1} parent=11 // pred_region
        _
      $region28: #{tpu_custom_call.1} parent=11 // pred_fallthru
        _
      // Predicated region
      $region29: #{tpu_custom_call.1} parent=11 // pred_check
        %p240 = pneg %p145
      $region30: #{tpu_custom_call.1} parent=11 // pred_check_branch
        %242 = sbr.rel (%p240) target = $region32
      $region31: #{tpu_custom_call.1} parent=11 // pred_region
        _
      $region32: #{tpu_custom_call.1} parent=11 // pred_fallthru
        _
      // Predicated region
      $region33: #{tpu_custom_call.1} parent=11 // pred_check
        %p243 = pneg %p166
      $region34: #{tpu_custom_call.1} parent=11 // pred_check_branch
        %245 = sbr.rel (%p243) target = $region36
      $region35: #{tpu_custom_call.1} parent=11 // pred_region
        _
      $region36: #{tpu_custom_call.1} parent=11 // pred_fallthru
        _
      // Predicated region
      $region37: #{tpu_custom_call.1} parent=11 // pred_check
        %p246 = pneg %p187
      $region38: #{tpu_custom_call.1} parent=11 // pred_check_branch
        %248 = sbr.rel (%p246) target = $region40
      $region39: #{tpu_custom_call.1} parent=11 // pred_region
        _
      $region40: #{tpu_custom_call.1} parent=11 // pred_fallthru
        _
    $region12: #{tpu_custom_call.1} parent=5 // pred_fallthru
      _
    %p249 = scmp.lt.s32.totalorder %s14, 2
    // Predicated region
    $region41: #{tpu_custom_call.1} parent=5 // pred_check
      %p250 = pneg %p249
    $region42: #{tpu_custom_call.1} parent=5 // pred_check_branch
      %252 = sbr.rel (%p250) target = $region44
    $region43: #{tpu_custom_call.1} parent=5 // pred_region
      // Predicated region
      $region45: #{tpu_custom_call.1} parent=43 // pred_check
        %p253 = pneg %p34
      $region46: #{tpu_custom_call.1} parent=43 // pred_check_branch
        %255 = sbr.rel (%p253) target = $region48
      $region47: #{tpu_custom_call.1} parent=43 // pred_region
        %s256 = smul.u32 54, %s14
        %p257 = scmp.lt.s32.totalorder %s256, 107
        %s258 = scalar_select %p257, %s256, 107
        %s259 = smul.addr %s258, 4
        %s260 = scalar_lea.vmem %s0, %s259
        %s261 = smul.u32 54, %s14
      $region48: #{tpu_custom_call.1} parent=43 // pred_fallthru
        _
    $region44: #{tpu_custom_call.1} parent=5 // pred_fallthru
      _
    %p262 = scmp.le.s32.totalorder 1, %s14
    %p263 = scmp.lt.s32.totalorder %s14, 3
    %p264 = pnand %p262, %p263
    %p265 = pneg %p264
    // Predicated region
    $region49: #{tpu_custom_call.1} parent=5 // pred_check
      _
    $region50: #{tpu_custom_call.1} parent=5 // pred_check_branch
      %267 = sbr.rel (%p264) target = $region52
    $region51: #{tpu_custom_call.1} parent=5 // pred_region
      %s268 = ssub.s32 %s14, 1
      %s269 = smul.u32 54, %s19
      %p270 = scmp.lt.s32.totalorder %s269, 107
      %s271 = scalar_select %p270, %s269, 107
      %s272 = smul.addr %s271, 4
      %s273 = scalar_lea.vmem %s0, %s272
      %p274 = pneg %p40
      %p275 = pneg %p37
      %p276 = pneg %p61
      %p277 = pneg %p58
      %p278 = pneg %p82
      %p279 = pneg %p79
      %p280 = pneg %p103
      %p281 = pneg %p100
      %p282 = pneg %p124
      %p283 = pneg %p121
      %p284 = pneg %p145
      %p285 = pneg %p142
      %p286 = pneg %p166
      %p287 = pneg %p163
      %p288 = pneg %p187
      %p289 = pneg %p184
      %p290 = pneg %p213
      %p291 = pneg %p210
      %s292 = smul.u32 48, %s19
      %p293 = scmp.lt.s32.totalorder %s292, 95
      %s294 = scalar_select %p293, %s292, 95
      %s295 = smul.addr %s294, 8
      %s296 = scalar_lea.vmem %s8, %s295
      %s297 = smul.u32 54, %s19
      %p298 = scmp.lt.s32.totalorder %s297, 107
      %s299 = scalar_select %p298, %s297, 107
      %s300 = smul.addr %s299, 4
      %s301 = scalar_lea.vmem %s0, %s300
      %s302 = smul.u32 54, %s19
      %s303 = smul.u32 48, %s19
      %p304 = scmp.lt.s32.totalorder %s303, 95
      %s305 = scalar_select %p304, %s303, 95
      %s306 = smul.addr %s305, 8
      %s307 = scalar_lea.vmem %s8, %s306
      %s308 = smul.u32 48, %s19
      %v310 = vld [vmem:[%s301] sm:$0xf]
      %v311 = vld [vmem:[%s301 + $0x4] sm:$0xf]
      %v312 = vld [vmem:[%s301 + $0x8] sm:$0xf]
      %v313 = vld [vmem:[%s301 + $0xc] sm:$0xf]
      %v314 = vld [vmem:[%s301 + $0x10] sm:$0xf]
      %v315 = vld [vmem:[%s301 + $0x14] sm:$0xf]
      %v316 = vld [vmem:[%s301 + $0x18] sm:$0xf]
      %v317 = vld [vmem:[%s301 + $0x1c] sm:$0xf]
      %v318 = vld [vmem:[%s301 + $0x20] sm:$0xf]
      %v319 = vld [vmem:[%s301 + $0x24] sm:$0xf]
      %v320 = vld [vmem:[%s301 + $0x28] sm:$0xf]
      %v321 = vld [vmem:[%s301 + $0x2c] sm:$0xf]
      %v322 = vld [vmem:[%s301 + $0x30] sm:$0xf]
      %v323 = vld [vmem:[%s301 + $0x34] sm:$0xf]
      %v324 = vld [vmem:[%s301 + $0x38] sm:$0xf]
      %v325 = vld [vmem:[%s301 + $0x3c] sm:$0xf]
      %v326 = vld [vmem:[%s301 + $0x40] sm:$0xf]
      %v327 = vld [vmem:[%s301 + $0x44] sm:$0xf]
      %v328 = vld [vmem:[%s301 + $0x48] sm:$0xf]
      %v329 = vld [vmem:[%s301 + $0x4c] sm:$0xf]
      %v330 = vld [vmem:[%s301 + $0x50] sm:$0xf]
      %v331 = vld [vmem:[%s301 + $0x54] sm:$0xf]
      %v332 = vld [vmem:[%s301 + $0x58] sm:$0xf]
      %v333 = vld [vmem:[%s301 + $0x5c] sm:$0xf]
      %v334 = vld [vmem:[%s301 + $0x60] sm:$0xf]
      %v335 = vld [vmem:[%s301 + $0x64] sm:$0xf]
      %v336 = vld [vmem:[%s301 + $0x68] sm:$0xf]
      %v337 = vld [vmem:[%s301 + $0x6c] sm:$0xf]
      %v338 = vld [vmem:[%s301 + $0x70] sm:$0xf]
      %v339 = vld [vmem:[%s301 + $0x74] sm:$0xf]
      %v340 = vld [vmem:[%s301 + $0x78] sm:$0xf]
      %v341 = vld [vmem:[%s301 + $0x7c] sm:$0xf]
      %v342 = vld [vmem:[%s301 + $0x80] sm:$0xf]
      %v343 = vld [vmem:[%s301 + $0x84] sm:$0xf]
      %v344 = vld [vmem:[%s301 + $0x88] sm:$0xf]
      %v345 = vld [vmem:[%s301 + $0x8c] sm:$0xf]
      %v346 = vld [vmem:[%s301 + $0x90] sm:$0xf]
      %v347 = vld [vmem:[%s301 + $0x94] sm:$0xf]
      %v348 = vld [vmem:[%s301 + $0x98] sm:$0xf]
      %v349 = vld [vmem:[%s301 + $0x9c] sm:$0xf]
      %v350 = vld [vmem:[%s301 + $0xa0] sm:$0xf]
      %v351 = vld [vmem:[%s301 + $0xa4] sm:$0xf]
      %v352 = vld [vmem:[%s301 + $0xa8] sm:$0xf]
      %v353 = vld [vmem:[%s301 + $0xac] sm:$0xf]
      %v354 = vld [vmem:[%s301 + $0xb0] sm:$0xf]
      %v355 = vld [vmem:[%s301 + $0xb4] sm:$0xf]
      %v356 = vld [vmem:[%s301 + $0xb8] sm:$0xf]
      %v357 = vld [vmem:[%s301 + $0xbc] sm:$0xf]
      %v358 = vld [vmem:[%s301 + $0xc0] sm:$0xf]
      %v359 = vld [vmem:[%s301 + $0xc4] sm:$0xf]
      %v360 = vld [vmem:[%s301 + $0xc8] sm:$0xf]
      %v361 = vld [vmem:[%s301 + $0xcc] sm:$0xf]
      %v362 = vld [vmem:[%s301 + $0xd0] sm:$0xf]
      %v363 = vld [vmem:[%s301 + $0xd4] sm:$0xf]
      %v364 = vld [vmem:[%s2] sm:$0x3]
      %v365 = vld [vmem:[%s5] sm:$0x1]
      %v367 = vperm.slane %v365, 0
      %v423 = vunpack.c.l.b16 %v310
      %v424 = vunpack.c.l.b16 %v311
      %v425 = vunpack.c.l.b16 %v312
      %v426 = vunpack.c.l.b16 %v313
      %v427 = vunpack.c.l.b16 %v314
      %v428 = vunpack.c.l.b16 %v315
      %v429 = vunpack.c.l.b16 %v316
      %v430 = vunpack.c.l.b16 %v317
      %v431 = vunpack.c.l.b16 %v318
      %v432 = vunpack.c.l.b16 %v319
      %v433 = vunpack.c.l.b16 %v320
      %v434 = vunpack.c.l.b16 %v321
      %v435 = vunpack.c.l.b16 %v322
      %v436 = vunpack.c.l.b16 %v323
      %v437 = vunpack.c.l.b16 %v324
      %v438 = vunpack.c.l.b16 %v325
      %v439 = vunpack.c.l.b16 %v326
      %v440 = vunpack.c.l.b16 %v327
      %v441 = vunpack.c.l.b16 %v328
      %v442 = vunpack.c.l.b16 %v329
      %v443 = vunpack.c.l.b16 %v330
      %v444 = vunpack.c.l.b16 %v331
      %v445 = vunpack.c.l.b16 %v332
      %v446 = vunpack.c.l.b16 %v333
      %v447 = vunpack.c.l.b16 %v334
      %v448 = vunpack.c.l.b16 %v335
      %v449 = vunpack.c.l.b16 %v336
      %v450 = vunpack.c.l.b16 %v337
      %v451 = vunpack.c.l.b16 %v338
      %v452 = vunpack.c.l.b16 %v339
      %v453 = vunpack.c.l.b16 %v340
      %v454 = vunpack.c.l.b16 %v341
      %v455 = vunpack.c.l.b16 %v342
      %v456 = vunpack.c.l.b16 %v343
      %v457 = vunpack.c.l.b16 %v344
      %v458 = vunpack.c.l.b16 %v345
      %v459 = vunpack.c.l.b16 %v346
      %v460 = vunpack.c.l.b16 %v347
      %v461 = vunpack.c.l.b16 %v348
      %v462 = vunpack.c.l.b16 %v349
      %v463 = vunpack.c.l.b16 %v350
      %v464 = vunpack.c.l.b16 %v351
      %v465 = vunpack.c.l.b16 %v352
      %v466 = vunpack.c.l.b16 %v353
      %v467 = vunpack.c.l.b16 %v354
      %v468 = vunpack.c.l.b16 %v355
      %v469 = vunpack.c.l.b16 %v356
      %v470 = vunpack.c.l.b16 %v357
      %v471 = vunpack.c.l.b16 %v358
      %v472 = vunpack.c.l.b16 %v359
      %v473 = vunpack.c.l.b16 %v360
      %v474 = vunpack.c.l.b16 %v361
      %v475 = vunpack.c.l.b16 %v362
      %v476 = vunpack.c.l.b16 %v363
      %v477 = vpack.c.b16 %v424, %v423
      %v478 = vpack.c.b16 %v426, %v425
      %v479 = vpack.c.b16 %v428, %v427
      %v480 = vpack.c.b16 %v430, %v429
      %v481 = vpack.c.b16 %v432, %v431
      %v482 = vpack.c.b16 %v434, %v433
      %v483 = vpack.c.b16 %v436, %v435
      %v484 = vpack.c.b16 %v438, %v437
      %v485 = vpack.c.b16 %v440, %v439
      %v486 = vpack.c.b16 %v442, %v441
      %v487 = vpack.c.b16 %v444, %v443
      %v488 = vpack.c.b16 %v446, %v445
      %v489 = vpack.c.b16 %v448, %v447
      %v490 = vpack.c.b16 %v450, %v449
      %v491 = vpack.c.b16 %v452, %v451
      %v492 = vpack.c.b16 %v454, %v453
      %v493 = vpack.c.b16 %v456, %v455
      %v494 = vpack.c.b16 %v458, %v457
      %v495 = vpack.c.b16 %v460, %v459
      %v496 = vpack.c.b16 %v462, %v461
      %v497 = vpack.c.b16 %v464, %v463
      %v498 = vpack.c.b16 %v466, %v465
      %v499 = vpack.c.b16 %v468, %v467
      %v500 = vpack.c.b16 %v470, %v469
      %v501 = vpack.c.b16 %v472, %v471
      %v502 = vpack.c.b16 %v474, %v473
      %v503 = vpack.c.b16 %v476, %v475
      %vm504 = vcmask 31744
      %v506 = vsel %vm504, %v477, 0
      %v509 = vsel %vm504, %v478, 0
      %v512 = vsel %vm504, %v479, 0
      %v515 = vsel %vm504, %v480, 0
      %v518 = vsel %vm504, %v481, 0
      %v521 = vsel %vm504, %v482, 0
      %v524 = vsel %vm504, %v483, 0
      %v527 = vsel %vm504, %v484, 0
      %v530 = vsel %vm504, %v485, 0
      %v533 = vsel %vm504, %v486, 0
      %v536 = vsel %vm504, %v487, 0
      %v539 = vsel %vm504, %v488, 0
      %v542 = vsel %vm504, %v489, 0
      %v545 = vsel %vm504, %v490, 0
      %v548 = vsel %vm504, %v491, 0
      %v551 = vsel %vm504, %v492, 0
      %v554 = vsel %vm504, %v493, 0
      %v557 = vsel %vm504, %v494, 0
      %v560 = vsel %vm504, %v495, 0
      %v563 = vsel %vm504, %v496, 0
      %v566 = vsel %vm504, %v497, 0
      %v569 = vsel %vm504, %v498, 0
      %v572 = vsel %vm504, %v499, 0
      %v575 = vsel %vm504, %v500, 0
      %v578 = vsel %vm504, %v501, 0
      %v581 = vsel %vm504, %v502, 0
      %v584 = vsel %vm504, %v503, 0
      %vm586 = vcmask 1041408
      %v588 = vsel %vm586, %v364, 0
      %590 = vmatpush.bf16.msra.mxu0 0
      %591 = vmatpush.bf16.msra.mxu0 0
      %592 = vmatpush.bf16.msra.mxu0 0
      %593 = vmatpush.bf16.msra.mxu0 0
      %594 = vmatpush.bf16.msra.mxu0 0
      %595 = vmatpush.bf16.msra.mxu0 0
      %596 = vmatpush.bf16.msra.mxu0 0
      %597 = vmatpush.bf16.msra.mxu0 %v588
      %598 = vmatmul.bf16.gmra.mxu0 %v506
      %v599 = vpop.f32.mrf.mxu0
      %v600 = vadd.f32 %v367, %v599
      %v601 = vpop.f32.mrf.mxu0
      %v602 = vadd.f32 %v367, %v601
      %603 = vmatmul.bf16.gmra.mxu0 %v509
      %v604 = vpop.f32.mrf.mxu0
      %v605 = vadd.f32 %v367, %v604
      %v606 = vpop.f32.mrf.mxu0
      %v607 = vadd.f32 %v367, %v606
      %608 = vmatmul.bf16.gmra.mxu0 %v512
      %v609 = vpop.f32.mrf.mxu0
      %v610 = vadd.f32 %v367, %v609
      %v611 = vpop.f32.mrf.mxu0
      %v612 = vadd.f32 %v367, %v611
      %613 = vmatmul.bf16.gmra.mxu0 %v515
      %v614 = vpop.f32.mrf.mxu0
      %v615 = vadd.f32 %v367, %v614
      %v616 = vpop.f32.mrf.mxu0
      %v617 = vadd.f32 %v367, %v616
      %618 = vmatmul.bf16.gmra.mxu0 %v518
      %v619 = vpop.f32.mrf.mxu0
      %v620 = vadd.f32 %v367, %v619
      %v621 = vpop.f32.mrf.mxu0
      %v622 = vadd.f32 %v367, %v621
      %623 = vmatmul.bf16.gmra.mxu0 %v521
      %v624 = vpop.f32.mrf.mxu0
      %v625 = vadd.f32 %v367, %v624
      %v626 = vpop.f32.mrf.mxu0
      %v627 = vadd.f32 %v367, %v626
      %628 = vmatmul.bf16.gmra.mxu0 %v524
      %v629 = vpop.f32.mrf.mxu0
      %v630 = vadd.f32 %v367, %v629
      %v631 = vpop.f32.mrf.mxu0
      %v632 = vadd.f32 %v367, %v631
      %633 = vmatmul.bf16.gmra.mxu0 %v527
      %v634 = vpop.f32.mrf.mxu0
      %v635 = vadd.f32 %v367, %v634
      %v636 = vpop.f32.mrf.mxu0
      %v637 = vadd.f32 %v367, %v636
      %638 = vmatmul.bf16.gmra.mxu0 %v530
      %v639 = vpop.f32.mrf.mxu0
      %v640 = vadd.f32 %v367, %v639
      %v641 = vpop.f32.mrf.mxu0
      %v642 = vadd.f32 %v367, %v641
      %643 = vmatmul.bf16.gmra.mxu0 %v533
      %v644 = vpop.f32.mrf.mxu0
      %v645 = vadd.f32 %v367, %v644
      %v646 = vpop.f32.mrf.mxu0
      %v647 = vadd.f32 %v367, %v646
      %648 = vmatmul.bf16.gmra.mxu0 %v536
      %v649 = vpop.f32.mrf.mxu0
      %v650 = vadd.f32 %v367, %v649
      %v651 = vpop.f32.mrf.mxu0
      %v652 = vadd.f32 %v367, %v651
      %653 = vmatmul.bf16.gmra.mxu0 %v539
      %v654 = vpop.f32.mrf.mxu0
      %v655 = vadd.f32 %v367, %v654
      %v656 = vpop.f32.mrf.mxu0
      %v657 = vadd.f32 %v367, %v656
      %658 = vmatmul.bf16.gmra.mxu0 %v542
      %v659 = vpop.f32.mrf.mxu0
      %v660 = vadd.f32 %v367, %v659
      %v661 = vpop.f32.mrf.mxu0
      %v662 = vadd.f32 %v367, %v661
      %663 = vmatmul.bf16.gmra.mxu0 %v545
      %v664 = vpop.f32.mrf.mxu0
      %v665 = vadd.f32 %v367, %v664
      %v666 = vpop.f32.mrf.mxu0
      %v667 = vadd.f32 %v367, %v666
      %668 = vmatmul.bf16.gmra.mxu0 %v548
      %v669 = vpop.f32.mrf.mxu0
      %v670 = vadd.f32 %v367, %v669
      %v671 = vpop.f32.mrf.mxu0
      %v672 = vadd.f32 %v367, %v671
      %673 = vmatmul.bf16.gmra.mxu0 %v551
      %v674 = vpop.f32.mrf.mxu0
      %v675 = vadd.f32 %v367, %v674
      %v676 = vpop.f32.mrf.mxu0
      %v677 = vadd.f32 %v367, %v676
      %678 = vmatmul.bf16.gmra.mxu0 %v554
      %v679 = vpop.f32.mrf.mxu0
      %v680 = vadd.f32 %v367, %v679
      %v681 = vpop.f32.mrf.mxu0
      %v682 = vadd.f32 %v367, %v681
      %683 = vmatmul.bf16.gmra.mxu0 %v557
      %v684 = vpop.f32.mrf.mxu0
      %v685 = vadd.f32 %v367, %v684
      %v686 = vpop.f32.mrf.mxu0
      %v687 = vadd.f32 %v367, %v686
      %688 = vmatmul.bf16.gmra.mxu0 %v560
      %v689 = vpop.f32.mrf.mxu0
      %v690 = vadd.f32 %v367, %v689
      %v691 = vpop.f32.mrf.mxu0
      %v692 = vadd.f32 %v367, %v691
      %693 = vmatmul.bf16.gmra.mxu0 %v563
      %v694 = vpop.f32.mrf.mxu0
      %v695 = vadd.f32 %v367, %v694
      %v696 = vpop.f32.mrf.mxu0
      %v697 = vadd.f32 %v367, %v696
      %698 = vmatmul.bf16.gmra.mxu0 %v566
      %v699 = vpop.f32.mrf.mxu0
      %v700 = vadd.f32 %v367, %v699
      %v701 = vpop.f32.mrf.mxu0
      %v702 = vadd.f32 %v367, %v701
      %703 = vmatmul.bf16.gmra.mxu0 %v569
      %v704 = vpop.f32.mrf.mxu0
      %v705 = vadd.f32 %v367, %v704
      %v706 = vpop.f32.mrf.mxu0
      %v707 = vadd.f32 %v367, %v706
      %708 = vmatmul.bf16.gmra.mxu0 %v572
      %v709 = vpop.f32.mrf.mxu0
      %v710 = vadd.f32 %v367, %v709
      %v711 = vpop.f32.mrf.mxu0
      %v712 = vadd.f32 %v367, %v711
      %713 = vmatmul.bf16.gmra.mxu0 %v575
      %v714 = vpop.f32.mrf.mxu0
      %v715 = vadd.f32 %v367, %v714
      %v716 = vpop.f32.mrf.mxu0
      %v717 = vadd.f32 %v367, %v716
      %718 = vmatmul.bf16.gmra.mxu0 %v578
      %v719 = vpop.f32.mrf.mxu0
      %v720 = vadd.f32 %v367, %v719
      %v721 = vpop.f32.mrf.mxu0
      %v722 = vadd.f32 %v367, %v721
      %723 = vmatmul.bf16.gmra.mxu0 %v581
      %v724 = vpop.f32.mrf.mxu0
      %v725 = vadd.f32 %v367, %v724
      %v726 = vpop.f32.mrf.mxu0
      %v727 = vadd.f32 %v367, %v726
      %728 = vmatmul.bf16.gmra.mxu0 %v584
      %v729 = vpop.f32.mrf.mxu0
      %v730 = vadd.f32 %v367, %v729
      %v731 = vpop.f32.mrf.mxu0
      %v732 = vadd.f32 %v367, %v731
      %733 = vdwg.mxu0
      %v734 = vmax.f32 %v600, 0.0
      %v735 = vmax.f32 %v602, 0.0
      %v736 = vmax.f32 %v605, 0.0
      %v737 = vmax.f32 %v607, 0.0
      %v738 = vmax.f32 %v610, 0.0
      %v739 = vmax.f32 %v612, 0.0
      %v740 = vmax.f32 %v615, 0.0
      %v741 = vmax.f32 %v617, 0.0
      %v742 = vmax.f32 %v620, 0.0
      %v743 = vmax.f32 %v622, 0.0
      %v744 = vmax.f32 %v625, 0.0
      %v745 = vmax.f32 %v627, 0.0
      %v746 = vmax.f32 %v630, 0.0
      %v747 = vmax.f32 %v632, 0.0
      %v748 = vmax.f32 %v635, 0.0
      %v749 = vmax.f32 %v637, 0.0
      %v750 = vmax.f32 %v640, 0.0
      %v751 = vmax.f32 %v642, 0.0
      %v752 = vmax.f32 %v645, 0.0
      %v753 = vmax.f32 %v647, 0.0
      %v754 = vmax.f32 %v650, 0.0
      %v755 = vmax.f32 %v652, 0.0
      %v756 = vmax.f32 %v655, 0.0
      %v757 = vmax.f32 %v657, 0.0
      %v758 = vmax.f32 %v660, 0.0
      %v759 = vmax.f32 %v662, 0.0
      %v760 = vmax.f32 %v665, 0.0
      %v761 = vmax.f32 %v667, 0.0
      %v762 = vmax.f32 %v670, 0.0
      %v763 = vmax.f32 %v672, 0.0
      %v764 = vmax.f32 %v675, 0.0
      %v765 = vmax.f32 %v677, 0.0
      %v766 = vmax.f32 %v680, 0.0
      %v767 = vmax.f32 %v682, 0.0
      %v768 = vmax.f32 %v685, 0.0
      %v769 = vmax.f32 %v687, 0.0
      %v770 = vmax.f32 %v690, 0.0
      %v771 = vmax.f32 %v692, 0.0
      %v772 = vmax.f32 %v695, 0.0
      %v773 = vmax.f32 %v697, 0.0
      %v774 = vmax.f32 %v700, 0.0
      %v775 = vmax.f32 %v702, 0.0
      %v776 = vmax.f32 %v705, 0.0
      %v777 = vmax.f32 %v707, 0.0
      %v778 = vmax.f32 %v710, 0.0
      %v779 = vmax.f32 %v712, 0.0
      %v780 = vmax.f32 %v715, 0.0
      %v781 = vmax.f32 %v717, 0.0
      %v782 = vmax.f32 %v720, 0.0
      %v783 = vmax.f32 %v722, 0.0
      %v784 = vmax.f32 %v725, 0.0
      %v785 = vmax.f32 %v727, 0.0
      %v786 = vmax.f32 %v730, 0.0
      %v787 = vmax.f32 %v732, 0.0
      %v788 = vld [vmem:[%s1] sm:$0xff]
      %v789 = vld [vmem:[%s1 + $0x8] sm:$0xff]
      %v790 = vld [vmem:[%s1 + $0x10] sm:$0xff]
      %v791 = vld [vmem:[%s1 + $0x18] sm:$0xff]
      %v792 = vld [vmem:[%s1 + $0x20] sm:$0xff]
      %v793 = vld [vmem:[%s1 + $0x28] sm:$0xff]
      %v794 = vld [vmem:[%s1 + $0x30] sm:$0xff]
      %v795 = vld [vmem:[%s1 + $0x38] sm:$0xff]
      %v796 = vld [vmem:[%s1 + $0x40] sm:$0xff]
      %v797 = vld [vmem:[%s1 + $0x48] sm:$0xff]
      %v798 = vld [vmem:[%s1 + $0x50] sm:$0xff]
      %v799 = vld [vmem:[%s1 + $0x58] sm:$0xff]
      %v800 = vld [vmem:[%s1 + $0x60] sm:$0xff]
      %v801 = vld [vmem:[%s1 + $0x68] sm:$0xff]
      %v802 = vld [vmem:[%s1 + $0x70] sm:$0xff]
      %v803 = vld [vmem:[%s1 + $0x78] sm:$0xff]
      %v804 = vld [vmem:[%s1 + $0x80] sm:$0xff]
      %v805 = vld [vmem:[%s1 + $0x88] sm:$0xff]
      %v806 = vld [vmem:[%s1 + $0x90] sm:$0xff]
      %v807 = vld [vmem:[%s1 + $0x98] sm:$0xff]
      %v808 = vld [vmem:[%s1 + $0xa0] sm:$0xff]
      %v809 = vld [vmem:[%s1 + $0xa8] sm:$0xff]
      %v810 = vld [vmem:[%s1 + $0xb0] sm:$0xff]
      %v811 = vld [vmem:[%s1 + $0xb8] sm:$0xff]
      %v812 = vld [vmem:[%s1 + $0xc0] sm:$0xff]
      %v813 = vld [vmem:[%s1 + $0xc8] sm:$0xff]
      %v814 = vld [vmem:[%s1 + $0xd0] sm:$0xff]
      %v815 = vld [vmem:[%s1 + $0xd8] sm:$0xff]
      %v816 = vld [vmem:[%s1 + $0xe0] sm:$0xff]
      %v817 = vld [vmem:[%s1 + $0xe8] sm:$0xff]
      %v818 = vld [vmem:[%s1 + $0xf0] sm:$0xff]
      %v819 = vld [vmem:[%s1 + $0xf8] sm:$0xff]
      %v820 = vld [vmem:[%s1 + $0x100] sm:$0xff]
      %v821 = vld [vmem:[%s1 + $0x108] sm:$0xff]
      %v822 = vld [vmem:[%s1 + $0x110] sm:$0xff]
      %v823 = vld [vmem:[%s1 + $0x118] sm:$0xff]
      %v824 = vld [vmem:[%s1 + $0x120] sm:$0xff]
      %v825 = vld [vmem:[%s1 + $0x128] sm:$0xff]
      %v826 = vld [vmem:[%s1 + $0x130] sm:$0xff]
      %v827 = vld [vmem:[%s1 + $0x138] sm:$0xff]
      %v828 = vld [vmem:[%s1 + $0x140] sm:$0xff]
      %v829 = vld [vmem:[%s1 + $0x148] sm:$0xff]
      %v830 = vld [vmem:[%s1 + $0x150] sm:$0xff]
      %v831 = vld [vmem:[%s1 + $0x158] sm:$0xff]
      %v832 = vld [vmem:[%s1 + $0x160] sm:$0xff]
      %v833 = vld [vmem:[%s1 + $0x168] sm:$0xff]
      %v834 = vld [vmem:[%s1 + $0x170] sm:$0xff]
      %v835 = vld [vmem:[%s1 + $0x178] sm:$0xff]
      %v836 = vld [vmem:[%s1 + $0x180] sm:$0xff]
      %v837 = vld [vmem:[%s1 + $0x188] sm:$0xff]
      %v838 = vld [vmem:[%s1 + $0x190] sm:$0xff]
      %v839 = vld [vmem:[%s1 + $0x198] sm:$0xff]
      %v840 = vld [vmem:[%s1 + $0x1a0] sm:$0xff]
      %v841 = vld [vmem:[%s1 + $0x1a8] sm:$0xff]
      %843 = vset.pattern.permute.xlu0 0
      %844 = vperm.xlu0 %843, %v788
      %v845 = vpop.permute.xlu0 %844
      %848 = vset.pattern.permute.xlu0 0
      %849 = vperm.xlu0 %848, %v789
      %v850 = vpop.permute.xlu0 %849
      %853 = vset.pattern.permute.xlu0 0
      %854 = vperm.xlu0 %853, %v790
      %v855 = vpop.permute.xlu0 %854
      %858 = vset.pattern.permute.xlu0 0
      %859 = vperm.xlu0 %858, %v791
      %v860 = vpop.permute.xlu0 %859
      %863 = vset.pattern.permute.xlu0 0
      %864 = vperm.xlu0 %863, %v792
      %v865 = vpop.permute.xlu0 %864
      %868 = vset.pattern.permute.xlu0 0
      %869 = vperm.xlu0 %868, %v793
      %v870 = vpop.permute.xlu0 %869
      %873 = vset.pattern.permute.xlu0 0
      %874 = vperm.xlu0 %873, %v794
      %v875 = vpop.permute.xlu0 %874
      %878 = vset.pattern.permute.xlu0 0
      %879 = vperm.xlu0 %878, %v795
      %v880 = vpop.permute.xlu0 %879
      %883 = vset.pattern.permute.xlu0 0
      %884 = vperm.xlu0 %883, %v796
      %v885 = vpop.permute.xlu0 %884
      %888 = vset.pattern.permute.xlu0 0
      %889 = vperm.xlu0 %888, %v797
      %v890 = vpop.permute.xlu0 %889
      %893 = vset.pattern.permute.xlu0 0
      %894 = vperm.xlu0 %893, %v798
      %v895 = vpop.permute.xlu0 %894
      %898 = vset.pattern.permute.xlu0 0
      %899 = vperm.xlu0 %898, %v799
      %v900 = vpop.permute.xlu0 %899
      %903 = vset.pattern.permute.xlu0 0
      %904 = vperm.xlu0 %903, %v800
      %v905 = vpop.permute.xlu0 %904
      %908 = vset.pattern.permute.xlu0 0
      %909 = vperm.xlu0 %908, %v801
      %v910 = vpop.permute.xlu0 %909
      %913 = vset.pattern.permute.xlu0 0
      %914 = vperm.xlu0 %913, %v802
      %v915 = vpop.permute.xlu0 %914
      %918 = vset.pattern.permute.xlu0 0
      %919 = vperm.xlu0 %918, %v803
      %v920 = vpop.permute.xlu0 %919
      %923 = vset.pattern.permute.xlu0 0
      %924 = vperm.xlu0 %923, %v804
      %v925 = vpop.permute.xlu0 %924
      %928 = vset.pattern.permute.xlu0 0
      %929 = vperm.xlu0 %928, %v805
      %v930 = vpop.permute.xlu0 %929
      %933 = vset.pattern.permute.xlu0 0
      %934 = vperm.xlu0 %933, %v806
      %v935 = vpop.permute.xlu0 %934
      %938 = vset.pattern.permute.xlu0 0
      %939 = vperm.xlu0 %938, %v807
      %v940 = vpop.permute.xlu0 %939
      %943 = vset.pattern.permute.xlu0 0
      %944 = vperm.xlu0 %943, %v808
      %v945 = vpop.permute.xlu0 %944
      %948 = vset.pattern.permute.xlu0 0
      %949 = vperm.xlu0 %948, %v809
      %v950 = vpop.permute.xlu0 %949
      %953 = vset.pattern.permute.xlu0 0
      %954 = vperm.xlu0 %953, %v810
      %v955 = vpop.permute.xlu0 %954
      %958 = vset.pattern.permute.xlu0 0
      %959 = vperm.xlu0 %958, %v811
      %v960 = vpop.permute.xlu0 %959
      %963 = vset.pattern.permute.xlu0 0
      %964 = vperm.xlu0 %963, %v812
      %v965 = vpop.permute.xlu0 %964
      %968 = vset.pattern.permute.xlu0 0
      %969 = vperm.xlu0 %968, %v813
      %v970 = vpop.permute.xlu0 %969
      %973 = vset.pattern.permute.xlu0 0
      %974 = vperm.xlu0 %973, %v814
      %v975 = vpop.permute.xlu0 %974
      %978 = vset.pattern.permute.xlu0 0
      %979 = vperm.xlu0 %978, %v815
      %v980 = vpop.permute.xlu0 %979
      %983 = vset.pattern.permute.xlu0 0
      %984 = vperm.xlu0 %983, %v816
      %v985 = vpop.permute.xlu0 %984
      %988 = vset.pattern.permute.xlu0 0
      %989 = vperm.xlu0 %988, %v817
      %v990 = vpop.permute.xlu0 %989
      %993 = vset.pattern.permute.xlu0 0
      %994 = vperm.xlu0 %993, %v818
      %v995 = vpop.permute.xlu0 %994
      %998 = vset.pattern.permute.xlu0 0
      %999 = vperm.xlu0 %998, %v819
      %v1000 = vpop.permute.xlu0 %999
      %1003 = vset.pattern.permute.xlu0 0
      %1004 = vperm.xlu0 %1003, %v820
      %v1005 = vpop.permute.xlu0 %1004
      %1008 = vset.pattern.permute.xlu0 0
      %1009 = vperm.xlu0 %1008, %v821
      %v1010 = vpop.permute.xlu0 %1009
      %1013 = vset.pattern.permute.xlu0 0
      %1014 = vperm.xlu0 %1013, %v822
      %v1015 = vpop.permute.xlu0 %1014
      %1018 = vset.pattern.permute.xlu0 0
      %1019 = vperm.xlu0 %1018, %v823
      %v1020 = vpop.permute.xlu0 %1019
      %1023 = vset.pattern.permute.xlu0 0
      %1024 = vperm.xlu0 %1023, %v824
      %v1025 = vpop.permute.xlu0 %1024
      %1028 = vset.pattern.permute.xlu0 0
      %1029 = vperm.xlu0 %1028, %v825
      %v1030 = vpop.permute.xlu0 %1029
      %1033 = vset.pattern.permute.xlu0 0
      %1034 = vperm.xlu0 %1033, %v826
      %v1035 = vpop.permute.xlu0 %1034
      %1038 = vset.pattern.permute.xlu0 0
      %1039 = vperm.xlu0 %1038, %v827
      %v1040 = vpop.permute.xlu0 %1039
      %1043 = vset.pattern.permute.xlu0 0
      %1044 = vperm.xlu0 %1043, %v828
      %v1045 = vpop.permute.xlu0 %1044
      %1048 = vset.pattern.permute.xlu0 0
      %1049 = vperm.xlu0 %1048, %v829
      %v1050 = vpop.permute.xlu0 %1049
      %1053 = vset.pattern.permute.xlu0 0
      %1054 = vperm.xlu0 %1053, %v830
      %v1055 = vpop.permute.xlu0 %1054
      %1058 = vset.pattern.permute.xlu0 0
      %1059 = vperm.xlu0 %1058, %v831
      %v1060 = vpop.permute.xlu0 %1059
      %1063 = vset.pattern.permute.xlu0 0
      %1064 = vperm.xlu0 %1063, %v832
      %v1065 = vpop.permute.xlu0 %1064
      %1068 = vset.pattern.permute.xlu0 0
      %1069 = vperm.xlu0 %1068, %v833
      %v1070 = vpop.permute.xlu0 %1069
      %1073 = vset.pattern.permute.xlu0 0
      %1074 = vperm.xlu0 %1073, %v834
      %v1075 = vpop.permute.xlu0 %1074
      %1078 = vset.pattern.permute.xlu0 0
      %1079 = vperm.xlu0 %1078, %v835
      %v1080 = vpop.permute.xlu0 %1079
      %1083 = vset.pattern.permute.xlu0 0
      %1084 = vperm.xlu0 %1083, %v836
      %v1085 = vpop.permute.xlu0 %1084
      %1088 = vset.pattern.permute.xlu0 0
      %1089 = vperm.xlu0 %1088, %v837
      %v1090 = vpop.permute.xlu0 %1089
      %1093 = vset.pattern.permute.xlu0 0
      %1094 = vperm.xlu0 %1093, %v838
      %v1095 = vpop.permute.xlu0 %1094
      %1098 = vset.pattern.permute.xlu0 0
      %1099 = vperm.xlu0 %1098, %v839
      %v1100 = vpop.permute.xlu0 %1099
      %1103 = vset.pattern.permute.xlu0 0
      %1104 = vperm.xlu0 %1103, %v840
      %v1105 = vpop.permute.xlu0 %1104
      %1108 = vset.pattern.permute.xlu0 0
      %1109 = vperm.xlu0 %1108, %v841
      %v1110 = vpop.permute.xlu0 %1109
      %v1112 = vmul.f32 %v734, %v845
      %v1113 = vmul.f32 %v735, %v850
      %v1114 = vmul.f32 %v736, %v855
      %v1115 = vmul.f32 %v737, %v860
      %v1116 = vmul.f32 %v738, %v865
      %v1117 = vmul.f32 %v739, %v870
      %v1118 = vmul.f32 %v740, %v875
      %v1119 = vmul.f32 %v741, %v880
      %v1120 = vmul.f32 %v742, %v885
      %v1121 = vmul.f32 %v743, %v890
      %v1122 = vmul.f32 %v744, %v895
      %v1123 = vmul.f32 %v745, %v900
      %v1124 = vmul.f32 %v746, %v905
      %v1125 = vmul.f32 %v747, %v910
      %v1126 = vmul.f32 %v748, %v915
      %v1127 = vmul.f32 %v749, %v920
      %v1128 = vmul.f32 %v750, %v925
      %v1129 = vmul.f32 %v751, %v930
      %v1130 = vmul.f32 %v752, %v935
      %v1131 = vmul.f32 %v753, %v940
      %v1132 = vmul.f32 %v754, %v945
      %v1133 = vmul.f32 %v755, %v950
      %v1134 = vmul.f32 %v756, %v955
      %v1135 = vmul.f32 %v757, %v960
      %v1136 = vmul.f32 %v758, %v965
      %v1137 = vmul.f32 %v759, %v970
      %v1138 = vmul.f32 %v760, %v975
      %v1139 = vmul.f32 %v761, %v980
      %v1140 = vmul.f32 %v762, %v985
      %v1141 = vmul.f32 %v763, %v990
      %v1142 = vmul.f32 %v764, %v995
      %v1143 = vmul.f32 %v765, %v1000
      %v1144 = vmul.f32 %v766, %v1005
      %v1145 = vmul.f32 %v767, %v1010
      %v1146 = vmul.f32 %v768, %v1015
      %v1147 = vmul.f32 %v769, %v1020
      %v1148 = vmul.f32 %v770, %v1025
      %v1149 = vmul.f32 %v771, %v1030
      %v1150 = vmul.f32 %v772, %v1035
      %v1151 = vmul.f32 %v773, %v1040
      %v1152 = vmul.f32 %v774, %v1045
      %v1153 = vmul.f32 %v775, %v1050
      %v1154 = vmul.f32 %v776, %v1055
      %v1155 = vmul.f32 %v777, %v1060
      %v1156 = vmul.f32 %v778, %v1065
      %v1157 = vmul.f32 %v779, %v1070
      %v1158 = vmul.f32 %v780, %v1075
      %v1159 = vmul.f32 %v781, %v1080
      %v1160 = vmul.f32 %v782, %v1085
      %v1161 = vmul.f32 %v783, %v1090
      %v1162 = vmul.f32 %v784, %v1095
      %v1163 = vmul.f32 %v785, %v1100
      %v1164 = vmul.f32 %v786, %v1105
      %v1165 = vmul.f32 %v787, %v1110
      %v1166 = vrot.slane %v1112, 7
      %v1167 = vrot.slane %v1113, 7
      %v1168 = vrot.slane %v1114, 7
      %v1169 = vrot.slane %v1115, 7
      %v1170 = vrot.slane %v1116, 7
      %v1171 = vrot.slane %v1117, 7
      %v1172 = vrot.slane %v1118, 7
      %v1173 = vrot.slane %v1119, 7
      %v1174 = vrot.slane %v1120, 7
      %v1175 = vrot.slane %v1121, 7
      %v1176 = vrot.slane %v1122, 7
      %v1177 = vrot.slane %v1123, 7
      %v1178 = vrot.slane %v1124, 7
      %v1179 = vrot.slane %v1125, 7
      %v1180 = vrot.slane %v1126, 7
      %v1181 = vrot.slane %v1127, 7
      %v1182 = vrot.slane %v1128, 7
      %v1183 = vrot.slane %v1129, 7
      %v1184 = vrot.slane %v1130, 7
      %v1185 = vrot.slane %v1131, 7
      %v1186 = vrot.slane %v1132, 7
      %v1187 = vrot.slane %v1133, 7
      %v1188 = vrot.slane %v1134, 7
      %v1189 = vrot.slane %v1135, 7
      %v1190 = vrot.slane %v1136, 7
      %v1191 = vrot.slane %v1137, 7
      %v1192 = vrot.slane %v1138, 7
      %v1193 = vrot.slane %v1139, 7
      %v1194 = vrot.slane %v1140, 7
      %v1195 = vrot.slane %v1141, 7
      %v1196 = vrot.slane %v1142, 7
      %v1197 = vrot.slane %v1143, 7
      %v1198 = vrot.slane %v1144, 7
      %v1199 = vrot.slane %v1145, 7
      %v1200 = vrot.slane %v1146, 7
      %v1201 = vrot.slane %v1147, 7
      %v1202 = vrot.slane %v1148, 7
      %v1203 = vrot.slane %v1149, 7
      %v1204 = vrot.slane %v1150, 7
      %v1205 = vrot.slane %v1151, 7
      %v1206 = vrot.slane %v1152, 7
      %v1207 = vrot.slane %v1153, 7
      %v1208 = vrot.slane %v1154, 7
      %v1209 = vrot.slane %v1155, 7
      %v1210 = vrot.slane %v1156, 7
      %v1211 = vrot.slane %v1157, 7
      %v1212 = vrot.slane %v1158, 7
      %v1213 = vrot.slane %v1159, 7
      %v1214 = vrot.slane %v1160, 7
      %v1215 = vrot.slane %v1161, 7
      %v1216 = vrot.slane %v1162, 7
      %v1217 = vrot.slane %v1163, 7
      %v1218 = vrot.slane %v1164, 7
      %v1219 = vrot.slane %v1165, 7
      %v1220 = vlaneseq
      %v1221 = vshrl.u32 %v1220, 7
      %vm1222 = vcmp.lt.s32.totalorder %v1221, 1
      %v1223 = vsel %vm1222, %v1218, %v1219
      %v1224 = vsel %vm1222, %v1217, %v1218
      %v1225 = vsel %vm1222, %v1216, %v1217
      %v1226 = vsel %vm1222, %v1215, %v1216
      %v1227 = vsel %vm1222, %v1214, %v1215
      %v1228 = vsel %vm1222, %v1213, %v1214
      %v1229 = vsel %vm1222, %v1212, %v1213
      %v1230 = vsel %vm1222, %v1211, %v1212
      %v1231 = vsel %vm1222, %v1210, %v1211
      %v1232 = vsel %vm1222, %v1209, %v1210
      %v1233 = vsel %vm1222, %v1208, %v1209
      %v1234 = vsel %vm1222, %v1207, %v1208
      %v1235 = vsel %vm1222, %v1206, %v1207
      %v1236 = vsel %vm1222, %v1205, %v1206
      %v1237 = vsel %vm1222, %v1204, %v1205
      %v1238 = vsel %vm1222, %v1203, %v1204
      %v1239 = vsel %vm1222, %v1202, %v1203
      %v1240 = vsel %vm1222, %v1201, %v1202
      %v1241 = vsel %vm1222, %v1200, %v1201
      %v1242 = vsel %vm1222, %v1199, %v1200
      %v1243 = vsel %vm1222, %v1198, %v1199
      %v1244 = vsel %vm1222, %v1197, %v1198
      %v1245 = vsel %vm1222, %v1196, %v1197
      %v1246 = vsel %vm1222, %v1195, %v1196
      %v1247 = vsel %vm1222, %v1194, %v1195
      %v1248 = vsel %vm1222, %v1193, %v1194
      %v1249 = vsel %vm1222, %v1192, %v1193
      %v1250 = vsel %vm1222, %v1191, %v1192
      %v1251 = vsel %vm1222, %v1190, %v1191
      %v1252 = vsel %vm1222, %v1189, %v1190
      %v1253 = vsel %vm1222, %v1188, %v1189
      %v1254 = vsel %vm1222, %v1187, %v1188
      %v1255 = vsel %vm1222, %v1186, %v1187
      %v1256 = vsel %vm1222, %v1185, %v1186
      %v1257 = vsel %vm1222, %v1184, %v1185
      %v1258 = vsel %vm1222, %v1183, %v1184
      %v1259 = vsel %vm1222, %v1182, %v1183
      %v1260 = vsel %vm1222, %v1181, %v1182
      %v1261 = vsel %vm1222, %v1180, %v1181
      %v1262 = vsel %vm1222, %v1179, %v1180
      %v1263 = vsel %vm1222, %v1178, %v1179
      %v1264 = vsel %vm1222, %v1177, %v1178
      %v1265 = vsel %vm1222, %v1176, %v1177
      %v1266 = vsel %vm1222, %v1175, %v1176
      %v1267 = vsel %vm1222, %v1174, %v1175
      %v1268 = vsel %vm1222, %v1173, %v1174
      %v1269 = vsel %vm1222, %v1172, %v1173
      %v1270 = vsel %vm1222, %v1171, %v1172
      %v1271 = vsel %vm1222, %v1170, %v1171
      %v1272 = vsel %vm1222, %v1169, %v1170
      %v1273 = vsel %vm1222, %v1168, %v1169
      %v1274 = vsel %vm1222, %v1167, %v1168
      %v1275 = vsel %vm1222, %v1166, %v1167
      %v1276 = vsel %vm1222, %v1219, %v1166
      %v1277 = vrot.slane %v1112, 1
      %v1278 = vrot.slane %v1113, 1
      %v1279 = vrot.slane %v1114, 1
      %v1280 = vrot.slane %v1115, 1
      %v1281 = vrot.slane %v1116, 1
      %v1282 = vrot.slane %v1117, 1
      %v1283 = vrot.slane %v1118, 1
      %v1284 = vrot.slane %v1119, 1
      %v1285 = vrot.slane %v1120, 1
      %v1286 = vrot.slane %v1121, 1
      %v1287 = vrot.slane %v1122, 1
      %v1288 = vrot.slane %v1123, 1
      %v1289 = vrot.slane %v1124, 1
      %v1290 = vrot.slane %v1125, 1
      %v1291 = vrot.slane %v1126, 1
      %v1292 = vrot.slane %v1127, 1
      %v1293 = vrot.slane %v1128, 1
      %v1294 = vrot.slane %v1129, 1
      %v1295 = vrot.slane %v1130, 1
      %v1296 = vrot.slane %v1131, 1
      %v1297 = vrot.slane %v1132, 1
      %v1298 = vrot.slane %v1133, 1
      %v1299 = vrot.slane %v1134, 1
      %v1300 = vrot.slane %v1135, 1
      %v1301 = vrot.slane %v1136, 1
      %v1302 = vrot.slane %v1137, 1
      %v1303 = vrot.slane %v1138, 1
      %v1304 = vrot.slane %v1139, 1
      %v1305 = vrot.slane %v1140, 1
      %v1306 = vrot.slane %v1141, 1
      %v1307 = vrot.slane %v1142, 1
      %v1308 = vrot.slane %v1143, 1
      %v1309 = vrot.slane %v1144, 1
      %v1310 = vrot.slane %v1145, 1
      %v1311 = vrot.slane %v1146, 1
      %v1312 = vrot.slane %v1147, 1
      %v1313 = vrot.slane %v1148, 1
      %v1314 = vrot.slane %v1149, 1
      %v1315 = vrot.slane %v1150, 1
      %v1316 = vrot.slane %v1151, 1
      %v1317 = vrot.slane %v1152, 1
      %v1318 = vrot.slane %v1153, 1
      %v1319 = vrot.slane %v1154, 1
      %v1320 = vrot.slane %v1155, 1
      %v1321 = vrot.slane %v1156, 1
      %v1322 = vrot.slane %v1157, 1
      %v1323 = vrot.slane %v1158, 1
      %v1324 = vrot.slane %v1159, 1
      %v1325 = vrot.slane %v1160, 1
      %v1326 = vrot.slane %v1161, 1
      %v1327 = vrot.slane %v1162, 1
      %v1328 = vrot.slane %v1163, 1
      %v1329 = vrot.slane %v1164, 1
      %v1330 = vrot.slane %v1165, 1
      %vm1331 = vcmp.lt.s32.totalorder %v1221, 7
      %v1332 = vsel %vm1331, %v1329, %v1330
      %v1333 = vsel %vm1331, %v1328, %v1329
      %v1334 = vsel %vm1331, %v1327, %v1328
      %v1335 = vsel %vm1331, %v1326, %v1327
      %v1336 = vsel %vm1331, %v1325, %v1326
      %v1337 = vsel %vm1331, %v1324, %v1325
      %v1338 = vsel %vm1331, %v1323, %v1324
      %v1339 = vsel %vm1331, %v1322, %v1323
      %v1340 = vsel %vm1331, %v1321, %v1322
      %v1341 = vsel %vm1331, %v1320, %v1321
      %v1342 = vsel %vm1331, %v1319, %v1320
      %v1343 = vsel %vm1331, %v1318, %v1319
      %v1344 = vsel %vm1331, %v1317, %v1318
      %v1345 = vsel %vm1331, %v1316, %v1317
      %v1346 = vsel %vm1331, %v1315, %v1316
      %v1347 = vsel %vm1331, %v1314, %v1315
      %v1348 = vsel %vm1331, %v1313, %v1314
      %v1349 = vsel %vm1331, %v1312, %v1313
      %v1350 = vsel %vm1331, %v1311, %v1312
      %v1351 = vsel %vm1331, %v1310, %v1311
      %v1352 = vsel %vm1331, %v1309, %v1310
      %v1353 = vsel %vm1331, %v1308, %v1309
      %v1354 = vsel %vm1331, %v1307, %v1308
      %v1355 = vsel %vm1331, %v1306, %v1307
      %v1356 = vsel %vm1331, %v1305, %v1306
      %v1357 = vsel %vm1331, %v1304, %v1305
      %v1358 = vsel %vm1331, %v1303, %v1304
      %v1359 = vsel %vm1331, %v1302, %v1303
      %v1360 = vsel %vm1331, %v1301, %v1302
      %v1361 = vsel %vm1331, %v1300, %v1301
      %v1362 = vsel %vm1331, %v1299, %v1300
      %v1363 = vsel %vm1331, %v1298, %v1299
      %v1364 = vsel %vm1331, %v1297, %v1298
      %v1365 = vsel %vm1331, %v1296, %v1297
      %v1366 = vsel %vm1331, %v1295, %v1296
      %v1367 = vsel %vm1331, %v1294, %v1295
      %v1368 = vsel %vm1331, %v1293, %v1294
      %v1369 = vsel %vm1331, %v1292, %v1293
      %v1370 = vsel %vm1331, %v1291, %v1292
      %v1371 = vsel %vm1331, %v1290, %v1291
      %v1372 = vsel %vm1331, %v1289, %v1290
      %v1373 = vsel %vm1331, %v1288, %v1289
      %v1374 = vsel %vm1331, %v1287, %v1288
      %v1375 = vsel %vm1331, %v1286, %v1287
      %v1376 = vsel %vm1331, %v1285, %v1286
      %v1377 = vsel %vm1331, %v1284, %v1285
      %v1378 = vsel %vm1331, %v1283, %v1284
      %v1379 = vsel %vm1331, %v1282, %v1283
      %v1380 = vsel %vm1331, %v1281, %v1282
      %v1381 = vsel %vm1331, %v1280, %v1281
      %v1382 = vsel %vm1331, %v1279, %v1280
      %v1383 = vsel %vm1331, %v1278, %v1279
      %v1384 = vsel %vm1331, %v1277, %v1278
      %v1385 = vsel %vm1331, %v1330, %v1277
      %1440 = vrot.lane.b32.xlu0 %v1112, 4
      %v1441 = vpop.permute.xlu0 %1440
      %1442 = vrot.lane.b32.xlu0 %v1113, 4
      %v1443 = vpop.permute.xlu0 %1442
      %1444 = vrot.lane.b32.xlu0 %v1114, 4
      %v1445 = vpop.permute.xlu0 %1444
      %1446 = vrot.lane.b32.xlu0 %v1115, 4
      %v1447 = vpop.permute.xlu0 %1446
      %1448 = vrot.lane.b32.xlu0 %v1116, 4
      %v1449 = vpop.permute.xlu0 %1448
      %1450 = vrot.lane.b32.xlu0 %v1117, 4
      %v1451 = vpop.permute.xlu0 %1450
      %1452 = vrot.lane.b32.xlu0 %v1118, 4
      %v1453 = vpop.permute.xlu0 %1452
      %1454 = vrot.lane.b32.xlu0 %v1119, 4
      %v1455 = vpop.permute.xlu0 %1454
      %1456 = vrot.lane.b32.xlu0 %v1120, 4
      %v1457 = vpop.permute.xlu0 %1456
      %1458 = vrot.lane.b32.xlu0 %v1121, 4
      %v1459 = vpop.permute.xlu0 %1458
      %1460 = vrot.lane.b32.xlu0 %v1122, 4
      %v1461 = vpop.permute.xlu0 %1460
      %1462 = vrot.lane.b32.xlu0 %v1123, 4
      %v1463 = vpop.permute.xlu0 %1462
      %1464 = vrot.lane.b32.xlu0 %v1124, 4
      %v1465 = vpop.permute.xlu0 %1464
      %1466 = vrot.lane.b32.xlu0 %v1125, 4
      %v1467 = vpop.permute.xlu0 %1466
      %1468 = vrot.lane.b32.xlu0 %v1126, 4
      %v1469 = vpop.permute.xlu0 %1468
      %1470 = vrot.lane.b32.xlu0 %v1127, 4
      %v1471 = vpop.permute.xlu0 %1470
      %1472 = vrot.lane.b32.xlu0 %v1128, 4
      %v1473 = vpop.permute.xlu0 %1472
      %1474 = vrot.lane.b32.xlu0 %v1129, 4
      %v1475 = vpop.permute.xlu0 %1474
      %1476 = vrot.lane.b32.xlu0 %v1130, 4
      %v1477 = vpop.permute.xlu0 %1476
      %1478 = vrot.lane.b32.xlu0 %v1131, 4
      %v1479 = vpop.permute.xlu0 %1478
      %1480 = vrot.lane.b32.xlu0 %v1132, 4
      %v1481 = vpop.permute.xlu0 %1480
      %1482 = vrot.lane.b32.xlu0 %v1133, 4
      %v1483 = vpop.permute.xlu0 %1482
      %1484 = vrot.lane.b32.xlu0 %v1134, 4
      %v1485 = vpop.permute.xlu0 %1484
      %1486 = vrot.lane.b32.xlu0 %v1135, 4
      %v1487 = vpop.permute.xlu0 %1486
      %1488 = vrot.lane.b32.xlu0 %v1136, 4
      %v1489 = vpop.permute.xlu0 %1488
      %1490 = vrot.lane.b32.xlu0 %v1137, 4
      %v1491 = vpop.permute.xlu0 %1490
      %1492 = vrot.lane.b32.xlu0 %v1138, 4
      %v1493 = vpop.permute.xlu0 %1492
      %1494 = vrot.lane.b32.xlu0 %v1139, 4
      %v1495 = vpop.permute.xlu0 %1494
      %1496 = vrot.lane.b32.xlu0 %v1140, 4
      %v1497 = vpop.permute.xlu0 %1496
      %1498 = vrot.lane.b32.xlu0 %v1141, 4
      %v1499 = vpop.permute.xlu0 %1498
      %1500 = vrot.lane.b32.xlu0 %v1142, 4
      %v1501 = vpop.permute.xlu0 %1500
      %1502 = vrot.lane.b32.xlu0 %v1143, 4
      %v1503 = vpop.permute.xlu0 %1502
      %1504 = vrot.lane.b32.xlu0 %v1144, 4
      %v1505 = vpop.permute.xlu0 %1504
      %1506 = vrot.lane.b32.xlu0 %v1145, 4
      %v1507 = vpop.permute.xlu0 %1506
      %1508 = vrot.lane.b32.xlu0 %v1146, 4
      %v1509 = vpop.permute.xlu0 %1508
      %1510 = vrot.lane.b32.xlu0 %v1147, 4
      %v1511 = vpop.permute.xlu0 %1510
      %1512 = vrot.lane.b32.xlu0 %v1148, 4
      %v1513 = vpop.permute.xlu0 %1512
      %1514 = vrot.lane.b32.xlu0 %v1149, 4
      %v1515 = vpop.permute.xlu0 %1514
      %1516 = vrot.lane.b32.xlu0 %v1150, 4
      %v1517 = vpop.permute.xlu0 %1516
      %1518 = vrot.lane.b32.xlu0 %v1151, 4
      %v1519 = vpop.permute.xlu0 %1518
      %1520 = vrot.lane.b32.xlu0 %v1152, 4
      %v1521 = vpop.permute.xlu0 %1520
      %1522 = vrot.lane.b32.xlu0 %v1153, 4
      %v1523 = vpop.permute.xlu0 %1522
      %1524 = vrot.lane.b32.xlu0 %v1154, 4
      %v1525 = vpop.permute.xlu0 %1524
      %1526 = vrot.lane.b32.xlu0 %v1155, 4
      %v1527 = vpop.permute.xlu0 %1526
      %1528 = vrot.lane.b32.xlu0 %v1156, 4
      %v1529 = vpop.permute.xlu0 %1528
      %1530 = vrot.lane.b32.xlu0 %v1157, 4
      %v1531 = vpop.permute.xlu0 %1530
      %1532 = vrot.lane.b32.xlu0 %v1158, 4
      %v1533 = vpop.permute.xlu0 %1532
      %1534 = vrot.lane.b32.xlu0 %v1159, 4
      %v1535 = vpop.permute.xlu0 %1534
      %1536 = vrot.lane.b32.xlu0 %v1160, 4
      %v1537 = vpop.permute.xlu0 %1536
      %1538 = vrot.lane.b32.xlu0 %v1161, 4
      %v1539 = vpop.permute.xlu0 %1538
      %1540 = vrot.lane.b32.xlu0 %v1162, 4
      %v1541 = vpop.permute.xlu0 %1540
      %1542 = vrot.lane.b32.xlu0 %v1163, 4
      %v1543 = vpop.permute.xlu0 %1542
      %1544 = vrot.lane.b32.xlu0 %v1164, 4
      %v1545 = vpop.permute.xlu0 %1544
      %1546 = vrot.lane.b32.xlu0 %v1165, 4
      %v1547 = vpop.permute.xlu0 %1546
      %1656 = vrot.lane.b32.xlu0 %v1384, 8
      %v1657 = vpop.permute.xlu0 %1656
      %1658 = vrot.lane.b32.xlu0 %v1383, 8
      %v1659 = vpop.permute.xlu0 %1658
      %1660 = vrot.lane.b32.xlu0 %v1382, 8
      %v1661 = vpop.permute.xlu0 %1660
      %1662 = vrot.lane.b32.xlu0 %v1381, 8
      %v1663 = vpop.permute.xlu0 %1662
      %1664 = vrot.lane.b32.xlu0 %v1380, 8
      %v1665 = vpop.permute.xlu0 %1664
      %1666 = vrot.lane.b32.xlu0 %v1379, 8
      %v1667 = vpop.permute.xlu0 %1666
      %1668 = vrot.lane.b32.xlu0 %v1378, 8
      %v1669 = vpop.permute.xlu0 %1668
      %1670 = vrot.lane.b32.xlu0 %v1377, 8
      %v1671 = vpop.permute.xlu0 %1670
      %1672 = vrot.lane.b32.xlu0 %v1376, 8
      %v1673 = vpop.permute.xlu0 %1672
      %1674 = vrot.lane.b32.xlu0 %v1375, 8
      %v1675 = vpop.permute.xlu0 %1674
      %1676 = vrot.lane.b32.xlu0 %v1374, 8
      %v1677 = vpop.permute.xlu0 %1676
      %1678 = vrot.lane.b32.xlu0 %v1373, 8
      %v1679 = vpop.permute.xlu0 %1678
      %1680 = vrot.lane.b32.xlu0 %v1372, 8
      %v1681 = vpop.permute.xlu0 %1680
      %1682 = vrot.lane.b32.xlu0 %v1371, 8
      %v1683 = vpop.permute.xlu0 %1682
      %1684 = vrot.lane.b32.xlu0 %v1370, 8
      %v1685 = vpop.permute.xlu0 %1684
      %1686 = vrot.lane.b32.xlu0 %v1369, 8
      %v1687 = vpop.permute.xlu0 %1686
      %1688 = vrot.lane.b32.xlu0 %v1368, 8
      %v1689 = vpop.permute.xlu0 %1688
      %1690 = vrot.lane.b32.xlu0 %v1367, 8
      %v1691 = vpop.permute.xlu0 %1690
      %1692 = vrot.lane.b32.xlu0 %v1366, 8
      %v1693 = vpop.permute.xlu0 %1692
      %1694 = vrot.lane.b32.xlu0 %v1365, 8
      %v1695 = vpop.permute.xlu0 %1694
      %1696 = vrot.lane.b32.xlu0 %v1364, 8
      %v1697 = vpop.permute.xlu0 %1696
      %1698 = vrot.lane.b32.xlu0 %v1363, 8
      %v1699 = vpop.permute.xlu0 %1698
      %1700 = vrot.lane.b32.xlu0 %v1362, 8
      %v1701 = vpop.permute.xlu0 %1700
      %1702 = vrot.lane.b32.xlu0 %v1361, 8
      %v1703 = vpop.permute.xlu0 %1702
      %1704 = vrot.lane.b32.xlu0 %v1360, 8
      %v1705 = vpop.permute.xlu0 %1704
      %1706 = vrot.lane.b32.xlu0 %v1359, 8
      %v1707 = vpop.permute.xlu0 %1706
      %1708 = vrot.lane.b32.xlu0 %v1358, 8
      %v1709 = vpop.permute.xlu0 %1708
      %1710 = vrot.lane.b32.xlu0 %v1357, 8
      %v1711 = vpop.permute.xlu0 %1710
      %1712 = vrot.lane.b32.xlu0 %v1356, 8
      %v1713 = vpop.permute.xlu0 %1712
      %1714 = vrot.lane.b32.xlu0 %v1355, 8
      %v1715 = vpop.permute.xlu0 %1714
      %1716 = vrot.lane.b32.xlu0 %v1354, 8
      %v1717 = vpop.permute.xlu0 %1716
      %1718 = vrot.lane.b32.xlu0 %v1353, 8
      %v1719 = vpop.permute.xlu0 %1718
      %1720 = vrot.lane.b32.xlu0 %v1352, 8
      %v1721 = vpop.permute.xlu0 %1720
      %1722 = vrot.lane.b32.xlu0 %v1351, 8
      %v1723 = vpop.permute.xlu0 %1722
      %1724 = vrot.lane.b32.xlu0 %v1350, 8
      %v1725 = vpop.permute.xlu0 %1724
      %1726 = vrot.lane.b32.xlu0 %v1349, 8
      %v1727 = vpop.permute.xlu0 %1726
      %1728 = vrot.lane.b32.xlu0 %v1348, 8
      %v1729 = vpop.permute.xlu0 %1728
      %1730 = vrot.lane.b32.xlu0 %v1347, 8
      %v1731 = vpop.permute.xlu0 %1730
      %1732 = vrot.lane.b32.xlu0 %v1346, 8
      %v1733 = vpop.permute.xlu0 %1732
      %1734 = vrot.lane.b32.xlu0 %v1345, 8
      %v1735 = vpop.permute.xlu0 %1734
      %1736 = vrot.lane.b32.xlu0 %v1344, 8
      %v1737 = vpop.permute.xlu0 %1736
      %1738 = vrot.lane.b32.xlu0 %v1343, 8
      %v1739 = vpop.permute.xlu0 %1738
      %1740 = vrot.lane.b32.xlu0 %v1342, 8
      %v1741 = vpop.permute.xlu0 %1740
      %1742 = vrot.lane.b32.xlu0 %v1341, 8
      %v1743 = vpop.permute.xlu0 %1742
      %1744 = vrot.lane.b32.xlu0 %v1340, 8
      %v1745 = vpop.permute.xlu0 %1744
      %1746 = vrot.lane.b32.xlu0 %v1339, 8
      %v1747 = vpop.permute.xlu0 %1746
      %1748 = vrot.lane.b32.xlu0 %v1338, 8
      %v1749 = vpop.permute.xlu0 %1748
      %1750 = vrot.lane.b32.xlu0 %v1337, 8
      %v1751 = vpop.permute.xlu0 %1750
      %1752 = vrot.lane.b32.xlu0 %v1336, 8
      %v1753 = vpop.permute.xlu0 %1752
      %1754 = vrot.lane.b32.xlu0 %v1335, 8
      %v1755 = vpop.permute.xlu0 %1754
      %1756 = vrot.lane.b32.xlu0 %v1334, 8
      %v1757 = vpop.permute.xlu0 %1756
      %1758 = vrot.lane.b32.xlu0 %v1333, 8
      %v1759 = vpop.permute.xlu0 %1758
      %1760 = vrot.lane.b32.xlu0 %v1332, 8
      %v1761 = vpop.permute.xlu0 %1760
      %1762 = vrot.lane.b32.xlu0 %v1385, 8
      %v1763 = vpop.permute.xlu0 %1762
      %v1818 = vsel %vm504, %v1276, %v1441
      %v1819 = vsel %vm504, %v1275, %v1443
      %v1820 = vsel %vm504, %v1274, %v1445
      %v1821 = vsel %vm504, %v1273, %v1447
      %v1822 = vsel %vm504, %v1272, %v1449
      %v1823 = vsel %vm504, %v1271, %v1451
      %v1824 = vsel %vm504, %v1270, %v1453
      %v1825 = vsel %vm504, %v1269, %v1455
      %v1826 = vsel %vm504, %v1268, %v1457
      %v1827 = vsel %vm504, %v1267, %v1459
      %v1828 = vsel %vm504, %v1266, %v1461
      %v1829 = vsel %vm504, %v1265, %v1463
      %v1830 = vsel %vm504, %v1264, %v1465
      %v1831 = vsel %vm504, %v1263, %v1467
      %v1832 = vsel %vm504, %v1262, %v1469
      %v1833 = vsel %vm504, %v1261, %v1471
      %v1834 = vsel %vm504, %v1260, %v1473
      %v1835 = vsel %vm504, %v1259, %v1475
      %v1836 = vsel %vm504, %v1258, %v1477
      %v1837 = vsel %vm504, %v1257, %v1479
      %v1838 = vsel %vm504, %v1256, %v1481
      %v1839 = vsel %vm504, %v1255, %v1483
      %v1840 = vsel %vm504, %v1254, %v1485
      %v1841 = vsel %vm504, %v1253, %v1487
      %v1842 = vsel %vm504, %v1252, %v1489
      %v1843 = vsel %vm504, %v1251, %v1491
      %v1844 = vsel %vm504, %v1250, %v1493
      %v1845 = vsel %vm504, %v1249, %v1495
      %v1846 = vsel %vm504, %v1248, %v1497
      %v1847 = vsel %vm504, %v1247, %v1499
      %v1848 = vsel %vm504, %v1246, %v1501
      %v1849 = vsel %vm504, %v1245, %v1503
      %v1850 = vsel %vm504, %v1244, %v1505
      %v1851 = vsel %vm504, %v1243, %v1507
      %v1852 = vsel %vm504, %v1242, %v1509
      %v1853 = vsel %vm504, %v1241, %v1511
      %v1854 = vsel %vm504, %v1240, %v1513
      %v1855 = vsel %vm504, %v1239, %v1515
      %v1856 = vsel %vm504, %v1238, %v1517
      %v1857 = vsel %vm504, %v1237, %v1519
      %v1858 = vsel %vm504, %v1236, %v1521
      %v1859 = vsel %vm504, %v1235, %v1523
      %v1860 = vsel %vm504, %v1234, %v1525
      %v1861 = vsel %vm504, %v1233, %v1527
      %v1862 = vsel %vm504, %v1232, %v1529
      %v1863 = vsel %vm504, %v1231, %v1531
      %v1864 = vsel %vm504, %v1230, %v1533
      %v1865 = vsel %vm504, %v1229, %v1535
      %v1866 = vsel %vm504, %v1228, %v1537
      %v1867 = vsel %vm504, %v1227, %v1539
      %v1868 = vsel %vm504, %v1226, %v1541
      %v1869 = vsel %vm504, %v1225, %v1543
      %v1870 = vsel %vm504, %v1224, %v1545
      %v1871 = vsel %vm504, %v1223, %v1547
      %vm1872 = vcmask 64512
      %v1873 = vsel %vm1872, %v1818, %v1657
      %v1874 = vsel %vm1872, %v1819, %v1659
      %v1875 = vsel %vm1872, %v1820, %v1661
      %v1876 = vsel %vm1872, %v1821, %v1663
      %v1877 = vsel %vm1872, %v1822, %v1665
      %v1878 = vsel %vm1872, %v1823, %v1667
      %v1879 = vsel %vm1872, %v1824, %v1669
      %v1880 = vsel %vm1872, %v1825, %v1671
      %v1881 = vsel %vm1872, %v1826, %v1673
      %v1882 = vsel %vm1872, %v1827, %v1675
      %v1883 = vsel %vm1872, %v1828, %v1677
      %v1884 = vsel %vm1872, %v1829, %v1679
      %v1885 = vsel %vm1872, %v1830, %v1681
      %v1886 = vsel %vm1872, %v1831, %v1683
      %v1887 = vsel %vm1872, %v1832, %v1685
      %v1888 = vsel %vm1872, %v1833, %v1687
      %v1889 = vsel %vm1872, %v1834, %v1689
      %v1890 = vsel %vm1872, %v1835, %v1691
      %v1891 = vsel %vm1872, %v1836, %v1693
      %v1892 = vsel %vm1872, %v1837, %v1695
      %v1893 = vsel %vm1872, %v1838, %v1697
      %v1894 = vsel %vm1872, %v1839, %v1699
      %v1895 = vsel %vm1872, %v1840, %v1701
      %v1896 = vsel %vm1872, %v1841, %v1703
      %v1897 = vsel %vm1872, %v1842, %v1705
      %v1898 = vsel %vm1872, %v1843, %v1707
      %v1899 = vsel %vm1872, %v1844, %v1709
      %v1900 = vsel %vm1872, %v1845, %v1711
      %v1901 = vsel %vm1872, %v1846, %v1713
      %v1902 = vsel %vm1872, %v1847, %v1715
      %v1903 = vsel %vm1872, %v1848, %v1717
      %v1904 = vsel %vm1872, %v1849, %v1719
      %v1905 = vsel %vm1872, %v1850, %v1721
      %v1906 = vsel %vm1872, %v1851, %v1723
      %v1907 = vsel %vm1872, %v1852, %v1725
      %v1908 = vsel %vm1872, %v1853, %v1727
      %v1909 = vsel %vm1872, %v1854, %v1729
      %v1910 = vsel %vm1872, %v1855, %v1731
      %v1911 = vsel %vm1872, %v1856, %v1733
      %v1912 = vsel %vm1872, %v1857, %v1735
      %v1913 = vsel %vm1872, %v1858, %v1737
      %v1914 = vsel %vm1872, %v1859, %v1739
      %v1915 = vsel %vm1872, %v1860, %v1741
      %v1916 = vsel %vm1872, %v1861, %v1743
      %v1917 = vsel %vm1872, %v1862, %v1745
      %v1918 = vsel %vm1872, %v1863, %v1747
      %v1919 = vsel %vm1872, %v1864, %v1749
      %v1920 = vsel %vm1872, %v1865, %v1751
      %v1921 = vsel %vm1872, %v1866, %v1753
      %v1922 = vsel %vm1872, %v1867, %v1755
      %v1923 = vsel %vm1872, %v1868, %v1757
      %v1924 = vsel %vm1872, %v1869, %v1759
      %v1925 = vsel %vm1872, %v1870, %v1761
      %v1926 = vsel %vm1872, %v1871, %v1763
      %v1927 = vpack.c.bf16 %v1925, %v1924
      %v1928 = vpack.c.bf16 %v1873, %v1926
      %v1929 = vpack.c.bf16 %v1875, %v1874
      %v1930 = vpack.c.bf16 %v1877, %v1876
      %v1931 = vpack.c.bf16 %v1879, %v1878
      %v1932 = vpack.c.bf16 %v1881, %v1880
      %v1933 = vpack.c.bf16 %v1883, %v1882
      %v1934 = vpack.c.bf16 %v1885, %v1884
      %v1935 = vpack.c.bf16 %v1887, %v1886
      %v1936 = vpack.c.bf16 %v1889, %v1888
      %v1937 = vpack.c.bf16 %v1891, %v1890
      %v1938 = vpack.c.bf16 %v1893, %v1892
      %v1939 = vpack.c.bf16 %v1895, %v1894
      %v1940 = vpack.c.bf16 %v1897, %v1896
      %v1941 = vpack.c.bf16 %v1899, %v1898
      %v1942 = vpack.c.bf16 %v1901, %v1900
      %v1943 = vpack.c.bf16 %v1903, %v1902
      %v1944 = vpack.c.bf16 %v1905, %v1904
      %v1945 = vpack.c.bf16 %v1907, %v1906
      %v1946 = vpack.c.bf16 %v1909, %v1908
      %v1947 = vpack.c.bf16 %v1911, %v1910
      %v1948 = vpack.c.bf16 %v1913, %v1912
      %v1949 = vpack.c.bf16 %v1915, %v1914
      %v1950 = vpack.c.bf16 %v1917, %v1916
      %v1951 = vpack.c.bf16 %v1919, %v1918
      %v1952 = vpack.c.bf16 %v1921, %v1920
      %v1953 = vpack.c.bf16 %v1923, %v1922
      %v1954 = vld [vmem:[%s3] sm:$0xf]
      %v1955 = vld [vmem:[%s3 + $0x4] sm:$0x3]
      %v1956 = vpack.c.bf16 %v1874, %v1873
      %v1957 = vpack.c.bf16 %v1876, %v1875
      %v1958 = vpack.c.bf16 %v1878, %v1877
      %v1959 = vpack.c.bf16 %v1880, %v1879
      %v1960 = vpack.c.bf16 %v1882, %v1881
      %v1961 = vpack.c.bf16 %v1884, %v1883
      %v1962 = vpack.c.bf16 %v1886, %v1885
      %v1963 = vpack.c.bf16 %v1888, %v1887
      %v1964 = vpack.c.bf16 %v1890, %v1889
      %v1965 = vpack.c.bf16 %v1892, %v1891
      %v1966 = vpack.c.bf16 %v1894, %v1893
      %v1967 = vpack.c.bf16 %v1896, %v1895
      %v1968 = vpack.c.bf16 %v1898, %v1897
      %v1969 = vpack.c.bf16 %v1900, %v1899
      %v1970 = vpack.c.bf16 %v1902, %v1901
      %v1971 = vpack.c.bf16 %v1904, %v1903
      %v1972 = vpack.c.bf16 %v1906, %v1905
      %v1973 = vpack.c.bf16 %v1908, %v1907
      %v1974 = vpack.c.bf16 %v1910, %v1909
      %v1975 = vpack.c.bf16 %v1912, %v1911
      %v1976 = vpack.c.bf16 %v1914, %v1913
      %v1977 = vpack.c.bf16 %v1916, %v1915
      %v1978 = vpack.c.bf16 %v1918, %v1917
      %v1979 = vpack.c.bf16 %v1920, %v1919
      %v1980 = vpack.c.bf16 %v1922, %v1921
      %v1981 = vpack.c.bf16 %v1924, %v1923
      %v1982 = vpack.c.bf16 %v1926, %v1925
      %s1983 = scalar_lea.vmem %s3, 8
      %v1984 = vld [vmem:[%s1983] sm:$0xf]
      %v1985 = vld [vmem:[%s1983 + $0x4] sm:$0x3]
      %v1988 = vunpack.c.l.b16 %v1984
      %v1989 = vunpack.c.l.b16 %v1985
      %v1990 = vpack.c.b16 %v1989, %v1988
      %vm1991 = vcmask 97280
      %v1993 = vsel %vm1991, %v1956, 0
      %v1996 = vsel %vm1991, %v1957, 0
      %v1999 = vsel %vm1991, %v1958, 0
      %v2002 = vsel %vm1991, %v1959, 0
      %v2005 = vsel %vm1991, %v1960, 0
      %v2008 = vsel %vm1991, %v1961, 0
      %v2011 = vsel %vm1991, %v1962, 0
      %v2014 = vsel %vm1991, %v1963, 0
      %v2017 = vsel %vm1991, %v1964, 0
      %v2020 = vsel %vm1991, %v1965, 0
      %v2023 = vsel %vm1991, %v1966, 0
      %v2026 = vsel %vm1991, %v1967, 0
      %v2029 = vsel %vm1991, %v1968, 0
      %v2032 = vsel %vm1991, %v1969, 0
      %v2035 = vsel %vm1991, %v1970, 0
      %v2038 = vsel %vm1991, %v1971, 0
      %v2041 = vsel %vm1991, %v1972, 0
      %v2044 = vsel %vm1991, %v1973, 0
      %v2047 = vsel %vm1991, %v1974, 0
      %v2050 = vsel %vm1991, %v1975, 0
      %v2053 = vsel %vm1991, %v1976, 0
      %v2056 = vsel %vm1991, %v1977, 0
      %v2059 = vsel %vm1991, %v1978, 0
      %v2062 = vsel %vm1991, %v1979, 0
      %v2065 = vsel %vm1991, %v1980, 0
      %v2068 = vsel %vm1991, %v1981, 0
      %v2071 = vsel %vm1991, %v1982, 0
      %vm2073 = vcmask 1045504
      %v2075 = vsel %vm2073, %v1990, 0
      %2077 = vmatpush.bf16.msra.mxu0 0
      %2078 = vmatpush.bf16.msra.mxu0 0
      %2079 = vmatpush.bf16.msra.mxu0 0
      %2080 = vmatpush.bf16.msra.mxu0 0
      %2081 = vmatpush.bf16.msra.mxu0 0
      %2082 = vmatpush.bf16.msra.mxu0 0
      %2083 = vmatpush.bf16.msra.mxu0 0
      %2084 = vmatpush.bf16.msra.mxu0 %v2075
      %2085 = vmatmul.bf16.gmra.mxu0 %v1993
      %v2086 = vpop.f32.mrf.mxu0
      %v2087 = vadd.f32 0.0, %v2086
      %v2088 = vpop.f32.mrf.mxu0
      %v2089 = vadd.f32 0.0, %v2088
      %2090 = vmatmul.bf16.gmra.mxu0 %v1996
      %v2091 = vpop.f32.mrf.mxu0
      %v2092 = vadd.f32 0.0, %v2091
      %v2093 = vpop.f32.mrf.mxu0
      %v2094 = vadd.f32 0.0, %v2093
      %2095 = vmatmul.bf16.gmra.mxu0 %v1999
      %v2096 = vpop.f32.mrf.mxu0
      %v2097 = vadd.f32 0.0, %v2096
      %v2098 = vpop.f32.mrf.mxu0
      %v2099 = vadd.f32 0.0, %v2098
      %2100 = vmatmul.bf16.gmra.mxu0 %v2002
      %v2101 = vpop.f32.mrf.mxu0
      %v2102 = vadd.f32 0.0, %v2101
      %v2103 = vpop.f32.mrf.mxu0
      %v2104 = vadd.f32 0.0, %v2103
      %2105 = vmatmul.bf16.gmra.mxu0 %v2005
      %v2106 = vpop.f32.mrf.mxu0
      %v2107 = vadd.f32 0.0, %v2106
      %v2108 = vpop.f32.mrf.mxu0
      %v2109 = vadd.f32 0.0, %v2108
      %2110 = vmatmul.bf16.gmra.mxu0 %v2008
      %v2111 = vpop.f32.mrf.mxu0
      %v2112 = vadd.f32 0.0, %v2111
      %v2113 = vpop.f32.mrf.mxu0
      %v2114 = vadd.f32 0.0, %v2113
      %2115 = vmatmul.bf16.gmra.mxu0 %v2011
      %v2116 = vpop.f32.mrf.mxu0
      %v2117 = vadd.f32 0.0, %v2116
      %v2118 = vpop.f32.mrf.mxu0
      %v2119 = vadd.f32 0.0, %v2118
      %2120 = vmatmul.bf16.gmra.mxu0 %v2014
      %v2121 = vpop.f32.mrf.mxu0
      %v2122 = vadd.f32 0.0, %v2121
      %v2123 = vpop.f32.mrf.mxu0
      %v2124 = vadd.f32 0.0, %v2123
      %2125 = vmatmul.bf16.gmra.mxu0 %v2017
      %v2126 = vpop.f32.mrf.mxu0
      %v2127 = vadd.f32 0.0, %v2126
      %v2128 = vpop.f32.mrf.mxu0
      %v2129 = vadd.f32 0.0, %v2128
      %2130 = vmatmul.bf16.gmra.mxu0 %v2020
      %v2131 = vpop.f32.mrf.mxu0
      %v2132 = vadd.f32 0.0, %v2131
      %v2133 = vpop.f32.mrf.mxu0
      %v2134 = vadd.f32 0.0, %v2133
      %2135 = vmatmul.bf16.gmra.mxu0 %v2023
      %v2136 = vpop.f32.mrf.mxu0
      %v2137 = vadd.f32 0.0, %v2136
      %v2138 = vpop.f32.mrf.mxu0
      %v2139 = vadd.f32 0.0, %v2138
      %2140 = vmatmul.bf16.gmra.mxu0 %v2026
      %v2141 = vpop.f32.mrf.mxu0
      %v2142 = vadd.f32 0.0, %v2141
      %v2143 = vpop.f32.mrf.mxu0
      %v2144 = vadd.f32 0.0, %v2143
      %2145 = vmatmul.bf16.gmra.mxu0 %v2029
      %v2146 = vpop.f32.mrf.mxu0
      %v2147 = vadd.f32 0.0, %v2146
      %v2148 = vpop.f32.mrf.mxu0
      %v2149 = vadd.f32 0.0, %v2148
      %2150 = vmatmul.bf16.gmra.mxu0 %v2032
      %v2151 = vpop.f32.mrf.mxu0
      %v2152 = vadd.f32 0.0, %v2151
      %v2153 = vpop.f32.mrf.mxu0
      %v2154 = vadd.f32 0.0, %v2153
      %2155 = vmatmul.bf16.gmra.mxu0 %v2035
      %v2156 = vpop.f32.mrf.mxu0
      %v2157 = vadd.f32 0.0, %v2156
      %v2158 = vpop.f32.mrf.mxu0
      %v2159 = vadd.f32 0.0, %v2158
      %2160 = vmatmul.bf16.gmra.mxu0 %v2038
      %v2161 = vpop.f32.mrf.mxu0
      %v2162 = vadd.f32 0.0, %v2161
      %v2163 = vpop.f32.mrf.mxu0
      %v2164 = vadd.f32 0.0, %v2163
      %2165 = vmatmul.bf16.gmra.mxu0 %v2041
      %v2166 = vpop.f32.mrf.mxu0
      %v2167 = vadd.f32 0.0, %v2166
      %v2168 = vpop.f32.mrf.mxu0
      %v2169 = vadd.f32 0.0, %v2168
      %2170 = vmatmul.bf16.gmra.mxu0 %v2044
      %v2171 = vpop.f32.mrf.mxu0
      %v2172 = vadd.f32 0.0, %v2171
      %v2173 = vpop.f32.mrf.mxu0
      %v2174 = vadd.f32 0.0, %v2173
      %2175 = vmatmul.bf16.gmra.mxu0 %v2047
      %v2176 = vpop.f32.mrf.mxu0
      %v2177 = vadd.f32 0.0, %v2176
      %v2178 = vpop.f32.mrf.mxu0
      %v2179 = vadd.f32 0.0, %v2178
      %2180 = vmatmul.bf16.gmra.mxu0 %v2050
      %v2181 = vpop.f32.mrf.mxu0
      %v2182 = vadd.f32 0.0, %v2181
      %v2183 = vpop.f32.mrf.mxu0
      %v2184 = vadd.f32 0.0, %v2183
      %2185 = vmatmul.bf16.gmra.mxu0 %v2053
      %v2186 = vpop.f32.mrf.mxu0
      %v2187 = vadd.f32 0.0, %v2186
      %v2188 = vpop.f32.mrf.mxu0
      %v2189 = vadd.f32 0.0, %v2188
      %2190 = vmatmul.bf16.gmra.mxu0 %v2056
      %v2191 = vpop.f32.mrf.mxu0
      %v2192 = vadd.f32 0.0, %v2191
      %v2193 = vpop.f32.mrf.mxu0
      %v2194 = vadd.f32 0.0, %v2193
      %2195 = vmatmul.bf16.gmra.mxu0 %v2059
      %v2196 = vpop.f32.mrf.mxu0
      %v2197 = vadd.f32 0.0, %v2196
      %v2198 = vpop.f32.mrf.mxu0
      %v2199 = vadd.f32 0.0, %v2198
      %2200 = vmatmul.bf16.gmra.mxu0 %v2062
      %v2201 = vpop.f32.mrf.mxu0
      %v2202 = vadd.f32 0.0, %v2201
      %v2203 = vpop.f32.mrf.mxu0
      %v2204 = vadd.f32 0.0, %v2203
      %2205 = vmatmul.bf16.gmra.mxu0 %v2065
      %v2206 = vpop.f32.mrf.mxu0
      %v2207 = vadd.f32 0.0, %v2206
      %v2208 = vpop.f32.mrf.mxu0
      %v2209 = vadd.f32 0.0, %v2208
      %2210 = vmatmul.bf16.gmra.mxu0 %v2068
      %v2211 = vpop.f32.mrf.mxu0
      %v2212 = vadd.f32 0.0, %v2211
      %v2213 = vpop.f32.mrf.mxu0
      %v2214 = vadd.f32 0.0, %v2213
      %2215 = vmatmul.bf16.gmra.mxu0 %v2071
      %v2216 = vpop.f32.mrf.mxu0
      %v2217 = vadd.f32 0.0, %v2216
      %v2218 = vpop.f32.mrf.mxu0
      %v2219 = vadd.f32 0.0, %v2218
      %2220 = vdwg.mxu0
      %v2223 = vunpack.c.l.b16 %v1954
      %v2224 = vunpack.c.l.b16 %v1955
      %v2225 = vpack.c.b16 %v2224, %v2223
      %v2227 = vsel %vm1991, %v1927, 0
      %v2230 = vsel %vm1991, %v1928, 0
      %v2233 = vsel %vm1991, %v1929, 0
      %v2236 = vsel %vm1991, %v1930, 0
      %v2239 = vsel %vm1991, %v1931, 0
      %v2242 = vsel %vm1991, %v1932, 0
      %v2245 = vsel %vm1991, %v1933, 0
      %v2248 = vsel %vm1991, %v1934, 0
      %v2251 = vsel %vm1991, %v1935, 0
      %v2254 = vsel %vm1991, %v1936, 0
      %v2257 = vsel %vm1991, %v1937, 0
      %v2260 = vsel %vm1991, %v1938, 0
      %v2263 = vsel %vm1991, %v1939, 0
      %v2266 = vsel %vm1991, %v1940, 0
      %v2269 = vsel %vm1991, %v1941, 0
      %v2272 = vsel %vm1991, %v1942, 0
      %v2275 = vsel %vm1991, %v1943, 0
      %v2278 = vsel %vm1991, %v1944, 0
      %v2281 = vsel %vm1991, %v1945, 0
      %v2284 = vsel %vm1991, %v1946, 0
      %v2287 = vsel %vm1991, %v1947, 0
      %v2290 = vsel %vm1991, %v1948, 0
      %v2293 = vsel %vm1991, %v1949, 0
      %v2296 = vsel %vm1991, %v1950, 0
      %v2299 = vsel %vm1991, %v1951, 0
      %v2302 = vsel %vm1991, %v1952, 0
      %v2305 = vsel %vm1991, %v1953, 0
      %v2308 = vsel %vm2073, %v2225, 0
      %2310 = vmatpush.bf16.msra.mxu0 0
      %2311 = vmatpush.bf16.msra.mxu0 0
      %2312 = vmatpush.bf16.msra.mxu0 0
      %2313 = vmatpush.bf16.msra.mxu0 0
      %2314 = vmatpush.bf16.msra.mxu0 0
      %2315 = vmatpush.bf16.msra.mxu0 0
      %2316 = vmatpush.bf16.msra.mxu0 0
      %2317 = vmatpush.bf16.msra.mxu0 %v2308
      %2318 = vmatmul.bf16.gmra.mxu0 %v2227
      %v2319 = vpop.f32.mrf.mxu0
      %v2320 = vadd.f32 %v2087, %v2319
      %v2321 = vpop.f32.mrf.mxu0
      %v2322 = vadd.f32 %v2089, %v2321
      %2323 = vmatmul.bf16.gmra.mxu0 %v2230
      %v2324 = vpop.f32.mrf.mxu0
      %v2325 = vadd.f32 %v2092, %v2324
      %v2326 = vpop.f32.mrf.mxu0
      %v2327 = vadd.f32 %v2094, %v2326
      %2328 = vmatmul.bf16.gmra.mxu0 %v2233
      %v2329 = vpop.f32.mrf.mxu0
      %v2330 = vadd.f32 %v2097, %v2329
      %v2331 = vpop.f32.mrf.mxu0
      %v2332 = vadd.f32 %v2099, %v2331
      %2333 = vmatmul.bf16.gmra.mxu0 %v2236
      %v2334 = vpop.f32.mrf.mxu0
      %v2335 = vadd.f32 %v2102, %v2334
      %v2336 = vpop.f32.mrf.mxu0
      %v2337 = vadd.f32 %v2104, %v2336
      %2338 = vmatmul.bf16.gmra.mxu0 %v2239
      %v2339 = vpop.f32.mrf.mxu0
      %v2340 = vadd.f32 %v2107, %v2339
      %v2341 = vpop.f32.mrf.mxu0
      %v2342 = vadd.f32 %v2109, %v2341
      %2343 = vmatmul.bf16.gmra.mxu0 %v2242
      %v2344 = vpop.f32.mrf.mxu0
      %v2345 = vadd.f32 %v2112, %v2344
      %v2346 = vpop.f32.mrf.mxu0
      %v2347 = vadd.f32 %v2114, %v2346
      %2348 = vmatmul.bf16.gmra.mxu0 %v2245
      %v2349 = vpop.f32.mrf.mxu0
      %v2350 = vadd.f32 %v2117, %v2349
      %v2351 = vpop.f32.mrf.mxu0
      %v2352 = vadd.f32 %v2119, %v2351
      %2353 = vmatmul.bf16.gmra.mxu0 %v2248
      %v2354 = vpop.f32.mrf.mxu0
      %v2355 = vadd.f32 %v2122, %v2354
      %v2356 = vpop.f32.mrf.mxu0
      %v2357 = vadd.f32 %v2124, %v2356
      %2358 = vmatmul.bf16.gmra.mxu0 %v2251
      %v2359 = vpop.f32.mrf.mxu0
      %v2360 = vadd.f32 %v2127, %v2359
      %v2361 = vpop.f32.mrf.mxu0
      %v2362 = vadd.f32 %v2129, %v2361
      %2363 = vmatmul.bf16.gmra.mxu0 %v2254
      %v2364 = vpop.f32.mrf.mxu0
      %v2365 = vadd.f32 %v2132, %v2364
      %v2366 = vpop.f32.mrf.mxu0
      %v2367 = vadd.f32 %v2134, %v2366
      %2368 = vmatmul.bf16.gmra.mxu0 %v2257
      %v2369 = vpop.f32.mrf.mxu0
      %v2370 = vadd.f32 %v2137, %v2369
      %v2371 = vpop.f32.mrf.mxu0
      %v2372 = vadd.f32 %v2139, %v2371
      %2373 = vmatmul.bf16.gmra.mxu0 %v2260
      %v2374 = vpop.f32.mrf.mxu0
      %v2375 = vadd.f32 %v2142, %v2374
      %v2376 = vpop.f32.mrf.mxu0
      %v2377 = vadd.f32 %v2144, %v2376
      %2378 = vmatmul.bf16.gmra.mxu0 %v2263
      %v2379 = vpop.f32.mrf.mxu0
      %v2380 = vadd.f32 %v2147, %v2379
      %v2381 = vpop.f32.mrf.mxu0
      %v2382 = vadd.f32 %v2149, %v2381
      %2383 = vmatmul.bf16.gmra.mxu0 %v2266
      %v2384 = vpop.f32.mrf.mxu0
      %v2385 = vadd.f32 %v2152, %v2384
      %v2386 = vpop.f32.mrf.mxu0
      %v2387 = vadd.f32 %v2154, %v2386
      %2388 = vmatmul.bf16.gmra.mxu0 %v2269
      %v2389 = vpop.f32.mrf.mxu0
      %v2390 = vadd.f32 %v2157, %v2389
      %v2391 = vpop.f32.mrf.mxu0
      %v2392 = vadd.f32 %v2159, %v2391
      %2393 = vmatmul.bf16.gmra.mxu0 %v2272
      %v2394 = vpop.f32.mrf.mxu0
      %v2395 = vadd.f32 %v2162, %v2394
      %v2396 = vpop.f32.mrf.mxu0
      %v2397 = vadd.f32 %v2164, %v2396
      %2398 = vmatmul.bf16.gmra.mxu0 %v2275
      %v2399 = vpop.f32.mrf.mxu0
      %v2400 = vadd.f32 %v2167, %v2399
      %v2401 = vpop.f32.mrf.mxu0
      %v2402 = vadd.f32 %v2169, %v2401
      %2403 = vmatmul.bf16.gmra.mxu0 %v2278
      %v2404 = vpop.f32.mrf.mxu0
      %v2405 = vadd.f32 %v2172, %v2404
      %v2406 = vpop.f32.mrf.mxu0
      %v2407 = vadd.f32 %v2174, %v2406
      %2408 = vmatmul.bf16.gmra.mxu0 %v2281
      %v2409 = vpop.f32.mrf.mxu0
      %v2410 = vadd.f32 %v2177, %v2409
      %v2411 = vpop.f32.mrf.mxu0
      %v2412 = vadd.f32 %v2179, %v2411
      %2413 = vmatmul.bf16.gmra.mxu0 %v2284
      %v2414 = vpop.f32.mrf.mxu0
      %v2415 = vadd.f32 %v2182, %v2414
      %v2416 = vpop.f32.mrf.mxu0
      %v2417 = vadd.f32 %v2184, %v2416
      %2418 = vmatmul.bf16.gmra.mxu0 %v2287
      %v2419 = vpop.f32.mrf.mxu0
      %v2420 = vadd.f32 %v2187, %v2419
      %v2421 = vpop.f32.mrf.mxu0
      %v2422 = vadd.f32 %v2189, %v2421
      %2423 = vmatmul.bf16.gmra.mxu0 %v2290
      %v2424 = vpop.f32.mrf.mxu0
      %v2425 = vadd.f32 %v2192, %v2424
      %v2426 = vpop.f32.mrf.mxu0
      %v2427 = vadd.f32 %v2194, %v2426
      %2428 = vmatmul.bf16.gmra.mxu0 %v2293
      %v2429 = vpop.f32.mrf.mxu0
      %v2430 = vadd.f32 %v2197, %v2429
      %v2431 = vpop.f32.mrf.mxu0
      %v2432 = vadd.f32 %v2199, %v2431
      %2433 = vmatmul.bf16.gmra.mxu0 %v2296
      %v2434 = vpop.f32.mrf.mxu0
      %v2435 = vadd.f32 %v2202, %v2434
      %v2436 = vpop.f32.mrf.mxu0
      %v2437 = vadd.f32 %v2204, %v2436
      %2438 = vmatmul.bf16.gmra.mxu0 %v2299
      %v2439 = vpop.f32.mrf.mxu0
      %v2440 = vadd.f32 %v2207, %v2439
      %v2441 = vpop.f32.mrf.mxu0
      %v2442 = vadd.f32 %v2209, %v2441
      %2443 = vmatmul.bf16.gmra.mxu0 %v2302
      %v2444 = vpop.f32.mrf.mxu0
      %v2445 = vadd.f32 %v2212, %v2444
      %v2446 = vpop.f32.mrf.mxu0
      %v2447 = vadd.f32 %v2214, %v2446
      %2448 = vmatmul.bf16.gmra.mxu0 %v2305
      %v2449 = vpop.f32.mrf.mxu0
      %v2450 = vadd.f32 %v2217, %v2449
      %v2451 = vpop.f32.mrf.mxu0
      %v2452 = vadd.f32 %v2219, %v2451
      %2453 = vdwg.mxu0
      %s2454 = scalar_lea.vmem %s3, 16
      %v2455 = vld [vmem:[%s2454] sm:$0xf]
      %v2456 = vld [vmem:[%s2454 + $0x4] sm:$0x3]
      %v2459 = vunpack.c.l.b16 %v2455
      %v2460 = vunpack.c.l.b16 %v2456
      %v2461 = vpack.c.b16 %v2460, %v2459
      %v2463 = vsel %vm2073, %v2461, 0
      %2465 = vmatpush.bf16.msra.mxu0 0
      %2466 = vmatpush.bf16.msra.mxu0 0
      %2467 = vmatpush.bf16.msra.mxu0 0
      %2468 = vmatpush.bf16.msra.mxu0 0
      %2469 = vmatpush.bf16.msra.mxu0 0
      %2470 = vmatpush.bf16.msra.mxu0 0
      %2471 = vmatpush.bf16.msra.mxu0 0
      %2472 = vmatpush.bf16.msra.mxu0 %v2463
      %2473 = vmatmul.bf16.gmra.mxu0 %v2236
      %v2474 = vpop.f32.mrf.mxu0
      %v2475 = vadd.f32 0.0, %v2474
      %v2476 = vpop.f32.mrf.mxu0
      %v2477 = vadd.f32 0.0, %v2476
      %2478 = vmatmul.bf16.gmra.mxu0 %v2239
      %v2479 = vpop.f32.mrf.mxu0
      %v2480 = vadd.f32 0.0, %v2479
      %v2481 = vpop.f32.mrf.mxu0
      %v2482 = vadd.f32 0.0, %v2481
      %2483 = vmatmul.bf16.gmra.mxu0 %v2242
      %v2484 = vpop.f32.mrf.mxu0
      %v2485 = vadd.f32 0.0, %v2484
      %v2486 = vpop.f32.mrf.mxu0
      %v2487 = vadd.f32 0.0, %v2486
      %2488 = vmatmul.bf16.gmra.mxu0 %v2245
      %v2489 = vpop.f32.mrf.mxu0
      %v2490 = vadd.f32 0.0, %v2489
      %v2491 = vpop.f32.mrf.mxu0
      %v2492 = vadd.f32 0.0, %v2491
      %2493 = vmatmul.bf16.gmra.mxu0 %v2248
      %v2494 = vpop.f32.mrf.mxu0
      %v2495 = vadd.f32 0.0, %v2494
      %v2496 = vpop.f32.mrf.mxu0
      %v2497 = vadd.f32 0.0, %v2496
      %2498 = vmatmul.bf16.gmra.mxu0 %v2251
      %v2499 = vpop.f32.mrf.mxu0
      %v2500 = vadd.f32 0.0, %v2499
      %v2501 = vpop.f32.mrf.mxu0
      %v2502 = vadd.f32 0.0, %v2501
      %2503 = vmatmul.bf16.gmra.mxu0 %v2254
      %v2504 = vpop.f32.mrf.mxu0
      %v2505 = vadd.f32 0.0, %v2504
      %v2506 = vpop.f32.mrf.mxu0
      %v2507 = vadd.f32 0.0, %v2506
      %2508 = vmatmul.bf16.gmra.mxu0 %v2257
      %v2509 = vpop.f32.mrf.mxu0
      %v2510 = vadd.f32 0.0, %v2509
      %v2511 = vpop.f32.mrf.mxu0
      %v2512 = vadd.f32 0.0, %v2511
      %2513 = vmatmul.bf16.gmra.mxu0 %v2260
      %v2514 = vpop.f32.mrf.mxu0
      %v2515 = vadd.f32 0.0, %v2514
      %v2516 = vpop.f32.mrf.mxu0
      %v2517 = vadd.f32 0.0, %v2516
      %2518 = vmatmul.bf16.gmra.mxu0 %v2263
      %v2519 = vpop.f32.mrf.mxu0
      %v2520 = vadd.f32 0.0, %v2519
      %v2521 = vpop.f32.mrf.mxu0
      %v2522 = vadd.f32 0.0, %v2521
      %2523 = vmatmul.bf16.gmra.mxu0 %v2266
      %v2524 = vpop.f32.mrf.mxu0
      %v2525 = vadd.f32 0.0, %v2524
      %v2526 = vpop.f32.mrf.mxu0
      %v2527 = vadd.f32 0.0, %v2526
      %2528 = vmatmul.bf16.gmra.mxu0 %v2269
      %v2529 = vpop.f32.mrf.mxu0
      %v2530 = vadd.f32 0.0, %v2529
      %v2531 = vpop.f32.mrf.mxu0
      %v2532 = vadd.f32 0.0, %v2531
      %2533 = vmatmul.bf16.gmra.mxu0 %v2272
      %v2534 = vpop.f32.mrf.mxu0
      %v2535 = vadd.f32 0.0, %v2534
      %v2536 = vpop.f32.mrf.mxu0
      %v2537 = vadd.f32 0.0, %v2536
      %2538 = vmatmul.bf16.gmra.mxu0 %v2275
      %v2539 = vpop.f32.mrf.mxu0
      %v2540 = vadd.f32 0.0, %v2539
      %v2541 = vpop.f32.mrf.mxu0
      %v2542 = vadd.f32 0.0, %v2541
      %2543 = vmatmul.bf16.gmra.mxu0 %v2278
      %v2544 = vpop.f32.mrf.mxu0
      %v2545 = vadd.f32 0.0, %v2544
      %v2546 = vpop.f32.mrf.mxu0
      %v2547 = vadd.f32 0.0, %v2546
      %2548 = vmatmul.bf16.gmra.mxu0 %v2281
      %v2549 = vpop.f32.mrf.mxu0
      %v2550 = vadd.f32 0.0, %v2549
      %v2551 = vpop.f32.mrf.mxu0
      %v2552 = vadd.f32 0.0, %v2551
      %2553 = vmatmul.bf16.gmra.mxu0 %v2284
      %v2554 = vpop.f32.mrf.mxu0
      %v2555 = vadd.f32 0.0, %v2554
      %v2556 = vpop.f32.mrf.mxu0
      %v2557 = vadd.f32 0.0, %v2556
      %2558 = vmatmul.bf16.gmra.mxu0 %v2287
      %v2559 = vpop.f32.mrf.mxu0
      %v2560 = vadd.f32 0.0, %v2559
      %v2561 = vpop.f32.mrf.mxu0
      %v2562 = vadd.f32 0.0, %v2561
      %2563 = vmatmul.bf16.gmra.mxu0 %v2290
      %v2564 = vpop.f32.mrf.mxu0
      %v2565 = vadd.f32 0.0, %v2564
      %v2566 = vpop.f32.mrf.mxu0
      %v2567 = vadd.f32 0.0, %v2566
      %2568 = vmatmul.bf16.gmra.mxu0 %v2293
      %v2569 = vpop.f32.mrf.mxu0
      %v2570 = vadd.f32 0.0, %v2569
      %v2571 = vpop.f32.mrf.mxu0
      %v2572 = vadd.f32 0.0, %v2571
      %2573 = vmatmul.bf16.gmra.mxu0 %v2296
      %v2574 = vpop.f32.mrf.mxu0
      %v2575 = vadd.f32 0.0, %v2574
      %v2576 = vpop.f32.mrf.mxu0
      %v2577 = vadd.f32 0.0, %v2576
      %2578 = vmatmul.bf16.gmra.mxu0 %v2299
      %v2579 = vpop.f32.mrf.mxu0
      %v2580 = vadd.f32 0.0, %v2579
      %v2581 = vpop.f32.mrf.mxu0
      %v2582 = vadd.f32 0.0, %v2581
      %2583 = vmatmul.bf16.gmra.mxu0 %v2302
      %v2584 = vpop.f32.mrf.mxu0
      %v2585 = vadd.f32 0.0, %v2584
      %v2586 = vpop.f32.mrf.mxu0
      %v2587 = vadd.f32 0.0, %v2586
      %2588 = vmatmul.bf16.gmra.mxu0 %v2305
      %v2589 = vpop.f32.mrf.mxu0
      %v2590 = vadd.f32 0.0, %v2589
      %v2591 = vpop.f32.mrf.mxu0
      %v2592 = vadd.f32 0.0, %v2591
      %2593 = vmatmul.bf16.gmra.mxu0 %v2227
      %v2594 = vpop.f32.mrf.mxu0
      %v2595 = vadd.f32 0.0, %v2594
      %v2596 = vpop.f32.mrf.mxu0
      %v2597 = vadd.f32 0.0, %v2596
      %2598 = vmatmul.bf16.gmra.mxu0 %v2230
      %v2599 = vpop.f32.mrf.mxu0
      %v2600 = vadd.f32 0.0, %v2599
      %v2601 = vpop.f32.mrf.mxu0
      %v2602 = vadd.f32 0.0, %v2601
      %2603 = vmatmul.bf16.gmra.mxu0 %v2233
      %v2604 = vpop.f32.mrf.mxu0
      %v2605 = vadd.f32 0.0, %v2604
      %v2606 = vpop.f32.mrf.mxu0
      %v2607 = vadd.f32 0.0, %v2606
      %2608 = vdwg.mxu0
      %v2609 = vadd.f32 %v2320, %v2475
      %v2610 = vadd.f32 %v2322, %v2477
      %v2611 = vadd.f32 %v2325, %v2480
      %v2612 = vadd.f32 %v2327, %v2482
      %v2613 = vadd.f32 %v2330, %v2485
      %v2614 = vadd.f32 %v2332, %v2487
      %v2615 = vadd.f32 %v2335, %v2490
      %v2616 = vadd.f32 %v2337, %v2492
      %v2617 = vadd.f32 %v2340, %v2495
      %v2618 = vadd.f32 %v2342, %v2497
      %v2619 = vadd.f32 %v2345, %v2500
      %v2620 = vadd.f32 %v2347, %v2502
      %v2621 = vadd.f32 %v2350, %v2505
      %v2622 = vadd.f32 %v2352, %v2507
      %v2623 = vadd.f32 %v2355, %v2510
      %v2624 = vadd.f32 %v2357, %v2512
      %v2625 = vadd.f32 %v2360, %v2515
      %v2626 = vadd.f32 %v2362, %v2517
      %v2627 = vadd.f32 %v2365, %v2520
      %v2628 = vadd.f32 %v2367, %v2522
      %v2629 = vadd.f32 %v2370, %v2525
      %v2630 = vadd.f32 %v2372, %v2527
      %v2631 = vadd.f32 %v2375, %v2530
      %v2632 = vadd.f32 %v2377, %v2532
      %v2633 = vadd.f32 %v2380, %v2535
      %v2634 = vadd.f32 %v2382, %v2537
      %v2635 = vadd.f32 %v2385, %v2540
      %v2636 = vadd.f32 %v2387, %v2542
      %v2637 = vadd.f32 %v2390, %v2545
      %v2638 = vadd.f32 %v2392, %v2547
      %v2639 = vadd.f32 %v2395, %v2550
      %v2640 = vadd.f32 %v2397, %v2552
      %v2641 = vadd.f32 %v2400, %v2555
      %v2642 = vadd.f32 %v2402, %v2557
      %v2643 = vadd.f32 %v2405, %v2560
      %v2644 = vadd.f32 %v2407, %v2562
      %v2645 = vadd.f32 %v2410, %v2565
      %v2646 = vadd.f32 %v2412, %v2567
      %v2647 = vadd.f32 %v2415, %v2570
      %v2648 = vadd.f32 %v2417, %v2572
      %v2649 = vadd.f32 %v2420, %v2575
      %v2650 = vadd.f32 %v2422, %v2577
      %v2651 = vadd.f32 %v2425, %v2580
      %v2652 = vadd.f32 %v2427, %v2582
      %v2653 = vadd.f32 %v2430, %v2585
      %v2654 = vadd.f32 %v2432, %v2587
      %v2655 = vadd.f32 %v2435, %v2590
      %v2656 = vadd.f32 %v2437, %v2592
      %v2657 = vadd.f32 %v2440, %v2595
      %v2658 = vadd.f32 %v2442, %v2597
      %v2659 = vadd.f32 %v2445, %v2600
      %v2660 = vadd.f32 %v2447, %v2602
      %v2661 = vadd.f32 %v2450, %v2605
      %v2662 = vadd.f32 %v2452, %v2607
      %v2663 = vld [vmem:[%s6] sm:$0x1]
      %v2665 = vperm.slane %v2663, 0
      %v2667 = vadd.f32 %v2609, %v2665
      %v2668 = vadd.f32 %v2610, %v2665
      %v2669 = vadd.f32 %v2611, %v2665
      %v2670 = vadd.f32 %v2612, %v2665
      %v2671 = vadd.f32 %v2613, %v2665
      %v2672 = vadd.f32 %v2614, %v2665
      %v2673 = vadd.f32 %v2615, %v2665
      %v2674 = vadd.f32 %v2616, %v2665
      %v2675 = vadd.f32 %v2617, %v2665
      %v2676 = vadd.f32 %v2618, %v2665
      %v2677 = vadd.f32 %v2619, %v2665
      %v2678 = vadd.f32 %v2620, %v2665
      %v2679 = vadd.f32 %v2621, %v2665
      %v2680 = vadd.f32 %v2622, %v2665
      %v2681 = vadd.f32 %v2623, %v2665
      %v2682 = vadd.f32 %v2624, %v2665
      %v2683 = vadd.f32 %v2625, %v2665
      %v2684 = vadd.f32 %v2626, %v2665
      %v2685 = vadd.f32 %v2627, %v2665
      %v2686 = vadd.f32 %v2628, %v2665
      %v2687 = vadd.f32 %v2629, %v2665
      %v2688 = vadd.f32 %v2630, %v2665
      %v2689 = vadd.f32 %v2631, %v2665
      %v2690 = vadd.f32 %v2632, %v2665
      %v2691 = vadd.f32 %v2633, %v2665
      %v2692 = vadd.f32 %v2634, %v2665
      %v2693 = vadd.f32 %v2635, %v2665
      %v2694 = vadd.f32 %v2636, %v2665
      %v2695 = vadd.f32 %v2637, %v2665
      %v2696 = vadd.f32 %v2638, %v2665
      %v2697 = vadd.f32 %v2639, %v2665
      %v2698 = vadd.f32 %v2640, %v2665
      %v2699 = vadd.f32 %v2641, %v2665
      %v2700 = vadd.f32 %v2642, %v2665
      %v2701 = vadd.f32 %v2643, %v2665
      %v2702 = vadd.f32 %v2644, %v2665
      %v2703 = vadd.f32 %v2645, %v2665
      %v2704 = vadd.f32 %v2646, %v2665
      %v2705 = vadd.f32 %v2647, %v2665
      %v2706 = vadd.f32 %v2648, %v2665
      %v2707 = vadd.f32 %v2649, %v2665
      %v2708 = vadd.f32 %v2650, %v2665
      %v2709 = vadd.f32 %v2651, %v2665
      %v2710 = vadd.f32 %v2652, %v2665
      %v2711 = vadd.f32 %v2653, %v2665
      %v2712 = vadd.f32 %v2654, %v2665
      %v2713 = vadd.f32 %v2655, %v2665
      %v2714 = vadd.f32 %v2656, %v2665
      %v2715 = vadd.f32 %v2657, %v2665
      %v2716 = vadd.f32 %v2658, %v2665
      %v2717 = vadd.f32 %v2659, %v2665
      %v2718 = vadd.f32 %v2660, %v2665
      %v2719 = vadd.f32 %v2661, %v2665
      %v2720 = vadd.f32 %v2662, %v2665
      %v2721 = vmax.f32 %v2667, 0.0
      %v2722 = vmax.f32 %v2668, 0.0
      %v2723 = vmax.f32 %v2669, 0.0
      %v2724 = vmax.f32 %v2670, 0.0
      %v2725 = vmax.f32 %v2671, 0.0
      %v2726 = vmax.f32 %v2672, 0.0
      %v2727 = vmax.f32 %v2673, 0.0
      %v2728 = vmax.f32 %v2674, 0.0
      %v2729 = vmax.f32 %v2675, 0.0
      %v2730 = vmax.f32 %v2676, 0.0
      %v2731 = vmax.f32 %v2677, 0.0
      %v2732 = vmax.f32 %v2678, 0.0
      %v2733 = vmax.f32 %v2679, 0.0
      %v2734 = vmax.f32 %v2680, 0.0
      %v2735 = vmax.f32 %v2681, 0.0
      %v2736 = vmax.f32 %v2682, 0.0
      %v2737 = vmax.f32 %v2683, 0.0
      %v2738 = vmax.f32 %v2684, 0.0
      %v2739 = vmax.f32 %v2685, 0.0
      %v2740 = vmax.f32 %v2686, 0.0
      %v2741 = vmax.f32 %v2687, 0.0
      %v2742 = vmax.f32 %v2688, 0.0
      %v2743 = vmax.f32 %v2689, 0.0
      %v2744 = vmax.f32 %v2690, 0.0
      %v2745 = vmax.f32 %v2691, 0.0
      %v2746 = vmax.f32 %v2692, 0.0
      %v2747 = vmax.f32 %v2693, 0.0
      %v2748 = vmax.f32 %v2694, 0.0
      %v2749 = vmax.f32 %v2695, 0.0
      %v2750 = vmax.f32 %v2696, 0.0
      %v2751 = vmax.f32 %v2697, 0.0
      %v2752 = vmax.f32 %v2698, 0.0
      %v2753 = vmax.f32 %v2699, 0.0
      %v2754 = vmax.f32 %v2700, 0.0
      %v2755 = vmax.f32 %v2701, 0.0
      %v2756 = vmax.f32 %v2702, 0.0
      %v2757 = vmax.f32 %v2703, 0.0
      %v2758 = vmax.f32 %v2704, 0.0
      %v2759 = vmax.f32 %v2705, 0.0
      %v2760 = vmax.f32 %v2706, 0.0
      %v2761 = vmax.f32 %v2707, 0.0
      %v2762 = vmax.f32 %v2708, 0.0
      %v2763 = vmax.f32 %v2709, 0.0
      %v2764 = vmax.f32 %v2710, 0.0
      %v2765 = vmax.f32 %v2711, 0.0
      %v2766 = vmax.f32 %v2712, 0.0
      %v2767 = vmax.f32 %v2713, 0.0
      %v2768 = vmax.f32 %v2714, 0.0
      %v2769 = vmax.f32 %v2715, 0.0
      %v2770 = vmax.f32 %v2716, 0.0
      %v2771 = vmax.f32 %v2717, 0.0
      %v2772 = vmax.f32 %v2718, 0.0
      %v2773 = vmax.f32 %v2719, 0.0
      %v2774 = vmax.f32 %v2720, 0.0
      %v2775 = vpack.c.bf16 %v2722, %v2721
      %v2776 = vpack.c.bf16 %v2724, %v2723
      %v2777 = vpack.c.bf16 %v2726, %v2725
      %v2778 = vpack.c.bf16 %v2728, %v2727
      %v2779 = vpack.c.bf16 %v2730, %v2729
      %v2780 = vpack.c.bf16 %v2732, %v2731
      %v2781 = vpack.c.bf16 %v2734, %v2733
      %v2782 = vpack.c.bf16 %v2736, %v2735
      %v2783 = vpack.c.bf16 %v2738, %v2737
      %v2784 = vpack.c.bf16 %v2740, %v2739
      %v2785 = vpack.c.bf16 %v2742, %v2741
      %v2786 = vpack.c.bf16 %v2744, %v2743
      %v2787 = vpack.c.bf16 %v2746, %v2745
      %v2788 = vpack.c.bf16 %v2748, %v2747
      %v2789 = vpack.c.bf16 %v2750, %v2749
      %v2790 = vpack.c.bf16 %v2752, %v2751
      %v2791 = vpack.c.bf16 %v2754, %v2753
      %v2792 = vpack.c.bf16 %v2756, %v2755
      %v2793 = vpack.c.bf16 %v2758, %v2757
      %v2794 = vpack.c.bf16 %v2760, %v2759
      %v2795 = vpack.c.bf16 %v2762, %v2761
      %v2796 = vpack.c.bf16 %v2764, %v2763
      %v2797 = vpack.c.bf16 %v2766, %v2765
      %v2798 = vpack.c.bf16 %v2768, %v2767
      %v2799 = vpack.c.bf16 %v2770, %v2769
      %v2800 = vpack.c.bf16 %v2772, %v2771
      %v2801 = vpack.c.bf16 %v2774, %v2773
      %v2802 = vld [vmem:[%s4] sm:$0x3]
      %v2803 = vld [vmem:[%s7] sm:$0x1]
      %v2805 = vperm.slane %v2803, 0
      %v2808 = vsel %vm504, %v2775, 0
      %v2811 = vsel %vm504, %v2776, 0
      %v2814 = vsel %vm504, %v2777, 0
      %v2817 = vsel %vm504, %v2778, 0
      %v2820 = vsel %vm504, %v2779, 0
      %v2823 = vsel %vm504, %v2780, 0
      %v2826 = vsel %vm504, %v2781, 0
      %v2829 = vsel %vm504, %v2782, 0
      %v2832 = vsel %vm504, %v2783, 0
      %v2835 = vsel %vm504, %v2784, 0
      %v2838 = vsel %vm504, %v2785, 0
      %v2841 = vsel %vm504, %v2786, 0
      %v2844 = vsel %vm504, %v2787, 0
      %v2847 = vsel %vm504, %v2788, 0
      %v2850 = vsel %vm504, %v2789, 0
      %v2853 = vsel %vm504, %v2790, 0
      %v2856 = vsel %vm504, %v2791, 0
      %v2859 = vsel %vm504, %v2792, 0
      %v2862 = vsel %vm504, %v2793, 0
      %v2865 = vsel %vm504, %v2794, 0
      %v2868 = vsel %vm504, %v2795, 0
      %v2871 = vsel %vm504, %v2796, 0
      %v2874 = vsel %vm504, %v2797, 0
      %v2877 = vsel %vm504, %v2798, 0
      %v2880 = vsel %vm504, %v2799, 0
      %v2883 = vsel %vm504, %v2800, 0
      %v2886 = vsel %vm504, %v2801, 0
      %v2889 = vsel %vm586, %v2802, 0
      %2891 = vmatpush.bf16.msra.mxu0 0
      %2892 = vmatpush.bf16.msra.mxu0 0
      %2893 = vmatpush.bf16.msra.mxu0 0
      %2894 = vmatpush.bf16.msra.mxu0 0
      %2895 = vmatpush.bf16.msra.mxu0 0
      %2896 = vmatpush.bf16.msra.mxu0 0
      %2897 = vmatpush.bf16.msra.mxu0 0
      %2898 = vmatpush.bf16.msra.mxu0 %v2889
      %2899 = vmatmul.bf16.gmra.mxu0 %v2808
      %v2900 = vpop.f32.mrf.mxu0
      %v2901 = vpop.f32.mrf.mxu0
      %2902 = vmatmul.bf16.gmra.mxu0 %v2811
      %v2903 = vpop.f32.mrf.mxu0
      %v2904 = vpop.f32.mrf.mxu0
      %v2905 = vadd.f32 %v2805, %v2904
      %2906 = vmatmul.bf16.gmra.mxu0 %v2814
      %v2907 = vpop.f32.mrf.mxu0
      %v2908 = vadd.f32 %v2805, %v2907
      %v2909 = vpop.f32.mrf.mxu0
      %v2910 = vadd.f32 %v2805, %v2909
      %2911 = vmatmul.bf16.gmra.mxu0 %v2817
      %v2912 = vpop.f32.mrf.mxu0
      %v2913 = vadd.f32 %v2805, %v2912
      %v2914 = vpop.f32.mrf.mxu0
      %v2915 = vadd.f32 %v2805, %v2914
      %2916 = vmatmul.bf16.gmra.mxu0 %v2820
      %v2917 = vpop.f32.mrf.mxu0
      %v2918 = vadd.f32 %v2805, %v2917
      %v2919 = vpop.f32.mrf.mxu0
      %v2920 = vadd.f32 %v2805, %v2919
      %2921 = vmatmul.bf16.gmra.mxu0 %v2823
      %v2922 = vpop.f32.mrf.mxu0
      %v2923 = vadd.f32 %v2805, %v2922
      %v2924 = vpop.f32.mrf.mxu0
      %v2925 = vadd.f32 %v2805, %v2924
      %2926 = vmatmul.bf16.gmra.mxu0 %v2826
      %v2927 = vpop.f32.mrf.mxu0
      %v2928 = vadd.f32 %v2805, %v2927
      %v2929 = vpop.f32.mrf.mxu0
      %v2930 = vadd.f32 %v2805, %v2929
      %2931 = vmatmul.bf16.gmra.mxu0 %v2829
      %v2932 = vpop.f32.mrf.mxu0
      %v2933 = vadd.f32 %v2805, %v2932
      %v2934 = vpop.f32.mrf.mxu0
      %v2935 = vadd.f32 %v2805, %v2934
      %2936 = vmatmul.bf16.gmra.mxu0 %v2832
      %v2937 = vpop.f32.mrf.mxu0
      %v2938 = vadd.f32 %v2805, %v2937
      %v2939 = vpop.f32.mrf.mxu0
      %v2940 = vadd.f32 %v2805, %v2939
      %2941 = vmatmul.bf16.gmra.mxu0 %v2835
      %v2942 = vpop.f32.mrf.mxu0
      %v2943 = vadd.f32 %v2805, %v2942
      %v2944 = vpop.f32.mrf.mxu0
      %v2945 = vadd.f32 %v2805, %v2944
      %2946 = vmatmul.bf16.gmra.mxu0 %v2838
      %v2947 = vpop.f32.mrf.mxu0
      %v2948 = vadd.f32 %v2805, %v2947
      %v2949 = vpop.f32.mrf.mxu0
      %v2950 = vadd.f32 %v2805, %v2949
      %2951 = vmatmul.bf16.gmra.mxu0 %v2841
      %v2952 = vpop.f32.mrf.mxu0
      %v2953 = vadd.f32 %v2805, %v2952
      %v2954 = vpop.f32.mrf.mxu0
      %v2955 = vadd.f32 %v2805, %v2954
      %2956 = vmatmul.bf16.gmra.mxu0 %v2844
      %v2957 = vpop.f32.mrf.mxu0
      %v2958 = vadd.f32 %v2805, %v2957
      %v2959 = vpop.f32.mrf.mxu0
      %v2960 = vadd.f32 %v2805, %v2959
      %2961 = vmatmul.bf16.gmra.mxu0 %v2847
      %v2962 = vpop.f32.mrf.mxu0
      %v2963 = vadd.f32 %v2805, %v2962
      %v2964 = vpop.f32.mrf.mxu0
      %v2965 = vadd.f32 %v2805, %v2964
      %2966 = vmatmul.bf16.gmra.mxu0 %v2850
      %v2967 = vpop.f32.mrf.mxu0
      %v2968 = vadd.f32 %v2805, %v2967
      %v2969 = vpop.f32.mrf.mxu0
      %v2970 = vadd.f32 %v2805, %v2969
      %2971 = vmatmul.bf16.gmra.mxu0 %v2853
      %v2972 = vpop.f32.mrf.mxu0
      %v2973 = vadd.f32 %v2805, %v2972
      %v2974 = vpop.f32.mrf.mxu0
      %v2975 = vadd.f32 %v2805, %v2974
      %2976 = vmatmul.bf16.gmra.mxu0 %v2856
      %v2977 = vpop.f32.mrf.mxu0
      %v2978 = vadd.f32 %v2805, %v2977
      %v2979 = vpop.f32.mrf.mxu0
      %v2980 = vadd.f32 %v2805, %v2979
      %2981 = vmatmul.bf16.gmra.mxu0 %v2859
      %v2982 = vpop.f32.mrf.mxu0
      %v2983 = vadd.f32 %v2805, %v2982
      %v2984 = vpop.f32.mrf.mxu0
      %v2985 = vadd.f32 %v2805, %v2984
      %2986 = vmatmul.bf16.gmra.mxu0 %v2862
      %v2987 = vpop.f32.mrf.mxu0
      %v2988 = vadd.f32 %v2805, %v2987
      %v2989 = vpop.f32.mrf.mxu0
      %v2990 = vadd.f32 %v2805, %v2989
      %2991 = vmatmul.bf16.gmra.mxu0 %v2865
      %v2992 = vpop.f32.mrf.mxu0
      %v2993 = vadd.f32 %v2805, %v2992
      %v2994 = vpop.f32.mrf.mxu0
      %v2995 = vadd.f32 %v2805, %v2994
      %2996 = vmatmul.bf16.gmra.mxu0 %v2868
      %v2997 = vpop.f32.mrf.mxu0
      %v2998 = vadd.f32 %v2805, %v2997
      %v2999 = vpop.f32.mrf.mxu0
      %v3000 = vadd.f32 %v2805, %v2999
      %3001 = vmatmul.bf16.gmra.mxu0 %v2871
      %v3002 = vpop.f32.mrf.mxu0
      %v3003 = vadd.f32 %v2805, %v3002
      %v3004 = vpop.f32.mrf.mxu0
      %v3005 = vadd.f32 %v2805, %v3004
      %3006 = vmatmul.bf16.gmra.mxu0 %v2874
      %v3007 = vpop.f32.mrf.mxu0
      %v3008 = vadd.f32 %v2805, %v3007
      %v3009 = vpop.f32.mrf.mxu0
      %v3010 = vadd.f32 %v2805, %v3009
      %3011 = vmatmul.bf16.gmra.mxu0 %v2877
      %v3012 = vpop.f32.mrf.mxu0
      %v3013 = vadd.f32 %v2805, %v3012
      %v3014 = vpop.f32.mrf.mxu0
      %v3015 = vadd.f32 %v2805, %v3014
      %3016 = vmatmul.bf16.gmra.mxu0 %v2880
      %v3017 = vpop.f32.mrf.mxu0
      %v3018 = vadd.f32 %v2805, %v3017
      %v3019 = vpop.f32.mrf.mxu0
      %v3020 = vadd.f32 %v2805, %v3019
      %3021 = vmatmul.bf16.gmra.mxu0 %v2883
      %v3022 = vpop.f32.mrf.mxu0
      %v3023 = vadd.f32 %v2805, %v3022
      %v3024 = vpop.f32.mrf.mxu0
      %3025 = vmatmul.bf16.gmra.mxu0 %v2886
      %v3026 = vpop.f32.mrf.mxu0
      %v3027 = vpop.f32.mrf.mxu0
      %3028 = vdwg.mxu0
      %v3029 = vunpack.c.l.bf16 %v313
      %v3030 = vunpack.c.l.bf16 %v314
      %v3031 = vunpack.c.l.bf16 %v315
      %v3032 = vunpack.c.l.bf16 %v316
      %v3033 = vunpack.c.l.bf16 %v317
      %v3034 = vunpack.c.l.bf16 %v318
      %v3035 = vunpack.c.l.bf16 %v319
      %v3036 = vunpack.c.l.bf16 %v320
      %v3037 = vunpack.c.l.bf16 %v321
      %v3038 = vunpack.c.l.bf16 %v322
      %v3039 = vunpack.c.l.bf16 %v323
      %v3040 = vunpack.c.l.bf16 %v324
      %v3041 = vunpack.c.l.bf16 %v325
      %v3042 = vunpack.c.l.bf16 %v326
      %v3043 = vunpack.c.l.bf16 %v327
      %v3044 = vunpack.c.l.bf16 %v328
      %v3045 = vunpack.c.l.bf16 %v329
      %v3046 = vunpack.c.l.bf16 %v330
      %v3047 = vunpack.c.l.bf16 %v331
      %v3048 = vunpack.c.l.bf16 %v332
      %v3049 = vunpack.c.l.bf16 %v333
      %v3050 = vunpack.c.l.bf16 %v334
      %v3051 = vunpack.c.l.bf16 %v335
      %v3052 = vunpack.c.l.bf16 %v336
      %v3053 = vunpack.c.l.bf16 %v337
      %v3054 = vunpack.c.l.bf16 %v338
      %v3055 = vunpack.c.l.bf16 %v339
      %v3056 = vunpack.c.l.bf16 %v340
      %v3057 = vunpack.c.l.bf16 %v341
      %v3058 = vunpack.c.l.bf16 %v342
      %v3059 = vunpack.c.l.bf16 %v343
      %v3060 = vunpack.c.l.bf16 %v344
      %v3061 = vunpack.c.l.bf16 %v345
      %v3062 = vunpack.c.l.bf16 %v346
      %v3063 = vunpack.c.l.bf16 %v347
      %v3064 = vunpack.c.l.bf16 %v348
      %v3065 = vunpack.c.l.bf16 %v349
      %v3066 = vunpack.c.l.bf16 %v350
      %v3067 = vunpack.c.l.bf16 %v351
      %v3068 = vunpack.c.l.bf16 %v352
      %v3069 = vunpack.c.l.bf16 %v353
      %v3070 = vunpack.c.l.bf16 %v354
      %v3071 = vunpack.c.l.bf16 %v355
      %v3072 = vunpack.c.l.bf16 %v356
      %v3073 = vunpack.c.l.bf16 %v357
      %v3074 = vunpack.c.l.bf16 %v358
      %v3075 = vunpack.c.l.bf16 %v359
      %v3076 = vunpack.c.l.bf16 %v360
      %v3077 = vsel %vm504, %v3029, 0.0
      %v3078 = vsel %vm504, %v3030, 0.0
      %v3079 = vsel %vm504, %v3031, 0.0
      %v3080 = vsel %vm504, %v3032, 0.0
      %v3081 = vsel %vm504, %v3033, 0.0
      %v3082 = vsel %vm504, %v3034, 0.0
      %v3083 = vsel %vm504, %v3035, 0.0
      %v3084 = vsel %vm504, %v3036, 0.0
      %v3085 = vsel %vm504, %v3037, 0.0
      %v3086 = vsel %vm504, %v3038, 0.0
      %v3087 = vsel %vm504, %v3039, 0.0
      %v3088 = vsel %vm504, %v3040, 0.0
      %v3089 = vsel %vm504, %v3041, 0.0
      %v3090 = vsel %vm504, %v3042, 0.0
      %v3091 = vsel %vm504, %v3043, 0.0
      %v3092 = vsel %vm504, %v3044, 0.0
      %v3093 = vsel %vm504, %v3045, 0.0
      %v3094 = vsel %vm504, %v3046, 0.0
      %v3095 = vsel %vm504, %v3047, 0.0
      %v3096 = vsel %vm504, %v3048, 0.0
      %v3097 = vsel %vm504, %v3049, 0.0
      %v3098 = vsel %vm504, %v3050, 0.0
      %v3099 = vsel %vm504, %v3051, 0.0
      %v3100 = vsel %vm504, %v3052, 0.0
      %v3101 = vsel %vm504, %v3053, 0.0
      %v3102 = vsel %vm504, %v3054, 0.0
      %v3103 = vsel %vm504, %v3055, 0.0
      %v3104 = vsel %vm504, %v3056, 0.0
      %v3105 = vsel %vm504, %v3057, 0.0
      %v3106 = vsel %vm504, %v3058, 0.0
      %v3107 = vsel %vm504, %v3059, 0.0
      %v3108 = vsel %vm504, %v3060, 0.0
      %v3109 = vsel %vm504, %v3061, 0.0
      %v3110 = vsel %vm504, %v3062, 0.0
      %v3111 = vsel %vm504, %v3063, 0.0
      %v3112 = vsel %vm504, %v3064, 0.0
      %v3113 = vsel %vm504, %v3065, 0.0
      %v3114 = vsel %vm504, %v3066, 0.0
      %v3115 = vsel %vm504, %v3067, 0.0
      %v3116 = vsel %vm504, %v3068, 0.0
      %v3117 = vsel %vm504, %v3069, 0.0
      %v3118 = vsel %vm504, %v3070, 0.0
      %v3119 = vsel %vm504, %v3071, 0.0
      %v3120 = vsel %vm504, %v3072, 0.0
      %v3121 = vsel %vm504, %v3073, 0.0
      %v3122 = vsel %vm504, %v3074, 0.0
      %v3123 = vsel %vm504, %v3075, 0.0
      %v3124 = vsel %vm504, %v3076, 0.0
      %v3125 = vadd.f32 %v2905, %v3077
      %v3126 = vadd.f32 %v2908, %v3078
      %v3127 = vadd.f32 %v2910, %v3079
      %v3128 = vadd.f32 %v2913, %v3080
      %v3129 = vadd.f32 %v2915, %v3081
      %v3130 = vadd.f32 %v2918, %v3082
      %v3131 = vadd.f32 %v2920, %v3083
      %v3132 = vadd.f32 %v2923, %v3084
      %v3133 = vadd.f32 %v2925, %v3085
      %v3134 = vadd.f32 %v2928, %v3086
      %v3135 = vadd.f32 %v2930, %v3087
      %v3136 = vadd.f32 %v2933, %v3088
      %v3137 = vadd.f32 %v2935, %v3089
      %v3138 = vadd.f32 %v2938, %v3090
      %v3139 = vadd.f32 %v2940, %v3091
      %v3140 = vadd.f32 %v2943, %v3092
      %v3141 = vadd.f32 %v2945, %v3093
      %v3142 = vadd.f32 %v2948, %v3094
      %v3143 = vadd.f32 %v2950, %v3095
      %v3144 = vadd.f32 %v2953, %v3096
      %v3145 = vadd.f32 %v2955, %v3097
      %v3146 = vadd.f32 %v2958, %v3098
      %v3147 = vadd.f32 %v2960, %v3099
      %v3148 = vadd.f32 %v2963, %v3100
      %v3149 = vadd.f32 %v2965, %v3101
      %v3150 = vadd.f32 %v2968, %v3102
      %v3151 = vadd.f32 %v2970, %v3103
      %v3152 = vadd.f32 %v2973, %v3104
      %v3153 = vadd.f32 %v2975, %v3105
      %v3154 = vadd.f32 %v2978, %v3106
      %v3155 = vadd.f32 %v2980, %v3107
      %v3156 = vadd.f32 %v2983, %v3108
      %v3157 = vadd.f32 %v2985, %v3109
      %v3158 = vadd.f32 %v2988, %v3110
      %v3159 = vadd.f32 %v2990, %v3111
      %v3160 = vadd.f32 %v2993, %v3112
      %v3161 = vadd.f32 %v2995, %v3113
      %v3162 = vadd.f32 %v2998, %v3114
      %v3163 = vadd.f32 %v3000, %v3115
      %v3164 = vadd.f32 %v3003, %v3116
      %v3165 = vadd.f32 %v3005, %v3117
      %v3166 = vadd.f32 %v3008, %v3118
      %v3167 = vadd.f32 %v3010, %v3119
      %v3168 = vadd.f32 %v3013, %v3120
      %v3169 = vadd.f32 %v3015, %v3121
      %v3170 = vadd.f32 %v3018, %v3122
      %v3171 = vadd.f32 %v3020, %v3123
      %v3172 = vadd.f32 %v3023, %v3124
      %vm3173 = vcmask 130048
      %3174 = vst.msk [vmem:[%s307] sm:$0xff] %vm3173, %v3125
      %3175 = vst.msk [vmem:[%s307 + $0x8] sm:$0xff] %vm3173, %v3126
      %3176 = vst.msk [vmem:[%s307 + $0x10] sm:$0xff] %vm3173, %v3127
      %3177 = vst.msk [vmem:[%s307 + $0x18] sm:$0xff] %vm3173, %v3128
      %3178 = vst.msk [vmem:[%s307 + $0x20] sm:$0xff] %vm3173, %v3129
      %3179 = vst.msk [vmem:[%s307 + $0x28] sm:$0xff] %vm3173, %v3130
      %3180 = vst.msk [vmem:[%s307 + $0x30] sm:$0xff] %vm3173, %v3131
      %3181 = vst.msk [vmem:[%s307 + $0x38] sm:$0xff] %vm3173, %v3132
      %3182 = vst.msk [vmem:[%s307 + $0x40] sm:$0xff] %vm3173, %v3133
      %3183 = vst.msk [vmem:[%s307 + $0x48] sm:$0xff] %vm3173, %v3134
      %3184 = vst.msk [vmem:[%s307 + $0x50] sm:$0xff] %vm3173, %v3135
      %3185 = vst.msk [vmem:[%s307 + $0x58] sm:$0xff] %vm3173, %v3136
      %3186 = vst.msk [vmem:[%s307 + $0x60] sm:$0xff] %vm3173, %v3137
      %3187 = vst.msk [vmem:[%s307 + $0x68] sm:$0xff] %vm3173, %v3138
      %3188 = vst.msk [vmem:[%s307 + $0x70] sm:$0xff] %vm3173, %v3139
      %3189 = vst.msk [vmem:[%s307 + $0x78] sm:$0xff] %vm3173, %v3140
      %3190 = vst.msk [vmem:[%s307 + $0x80] sm:$0xff] %vm3173, %v3141
      %3191 = vst.msk [vmem:[%s307 + $0x88] sm:$0xff] %vm3173, %v3142
      %3192 = vst.msk [vmem:[%s307 + $0x90] sm:$0xff] %vm3173, %v3143
      %3193 = vst.msk [vmem:[%s307 + $0x98] sm:$0xff] %vm3173, %v3144
      %3194 = vst.msk [vmem:[%s307 + $0xa0] sm:$0xff] %vm3173, %v3145
      %3195 = vst.msk [vmem:[%s307 + $0xa8] sm:$0xff] %vm3173, %v3146
      %3196 = vst.msk [vmem:[%s307 + $0xb0] sm:$0xff] %vm3173, %v3147
      %3197 = vst.msk [vmem:[%s307 + $0xb8] sm:$0xff] %vm3173, %v3148
      %3198 = vst.msk [vmem:[%s307 + $0xc0] sm:$0xff] %vm3173, %v3149
      %3199 = vst.msk [vmem:[%s307 + $0xc8] sm:$0xff] %vm3173, %v3150
      %3200 = vst.msk [vmem:[%s307 + $0xd0] sm:$0xff] %vm3173, %v3151
      %3201 = vst.msk [vmem:[%s307 + $0xd8] sm:$0xff] %vm3173, %v3152
      %3202 = vst.msk [vmem:[%s307 + $0xe0] sm:$0xff] %vm3173, %v3153
      %3203 = vst.msk [vmem:[%s307 + $0xe8] sm:$0xff] %vm3173, %v3154
      %3204 = vst.msk [vmem:[%s307 + $0xf0] sm:$0xff] %vm3173, %v3155
      %3205 = vst.msk [vmem:[%s307 + $0xf8] sm:$0xff] %vm3173, %v3156
      %3206 = vst.msk [vmem:[%s307 + $0x100] sm:$0xff] %vm3173, %v3157
      %3207 = vst.msk [vmem:[%s307 + $0x108] sm:$0xff] %vm3173, %v3158
      %3208 = vst.msk [vmem:[%s307 + $0x110] sm:$0xff] %vm3173, %v3159
      %3209 = vst.msk [vmem:[%s307 + $0x118] sm:$0xff] %vm3173, %v3160
      %3210 = vst.msk [vmem:[%s307 + $0x120] sm:$0xff] %vm3173, %v3161
      %3211 = vst.msk [vmem:[%s307 + $0x128] sm:$0xff] %vm3173, %v3162
      %3212 = vst.msk [vmem:[%s307 + $0x130] sm:$0xff] %vm3173, %v3163
      %3213 = vst.msk [vmem:[%s307 + $0x138] sm:$0xff] %vm3173, %v3164
      %3214 = vst.msk [vmem:[%s307 + $0x140] sm:$0xff] %vm3173, %v3165
      %3215 = vst.msk [vmem:[%s307 + $0x148] sm:$0xff] %vm3173, %v3166
      %3216 = vst.msk [vmem:[%s307 + $0x150] sm:$0xff] %vm3173, %v3167
      %3217 = vst.msk [vmem:[%s307 + $0x158] sm:$0xff] %vm3173, %v3168
      %3218 = vst.msk [vmem:[%s307 + $0x160] sm:$0xff] %vm3173, %v3169
      %3219 = vst.msk [vmem:[%s307 + $0x168] sm:$0xff] %vm3173, %v3170
      %3220 = vst.msk [vmem:[%s307 + $0x170] sm:$0xff] %vm3173, %v3171
      %3221 = vst.msk [vmem:[%s307 + $0x178] sm:$0xff] %vm3173, %v3172
      %s3222 = smul.u32 48, %s19
      %p3223 = scmp.lt.s32.totalorder %s3222, 95
      %s3224 = scalar_select %p3223, %s3222, 95
      %s3225 = smul.addr %s3224, 8
      %s3226 = scalar_lea.vmem %s8, %s3225
      // Predicated region
      $region53: #{tpu_custom_call.1} parent=51 // pred_check
        %p3227 = pneg %p210
      $region54: #{tpu_custom_call.1} parent=51 // pred_check_branch
        %3229 = sbr.rel (%p3227) target = $region56
      $region55: #{tpu_custom_call.1} parent=51 // pred_region
        %s3230 = smul.u32 48, %s19
      $region56: #{tpu_custom_call.1} parent=51 // pred_fallthru
        _
    $region52: #{tpu_custom_call.1} parent=5 // pred_fallthru
      _
    %p3231 = scmp.le.s32.totalorder 2, %s14
    // Predicated region
    $region57: #{tpu_custom_call.1} parent=5 // pred_check
      %p3232 = pneg %p3231
    $region58: #{tpu_custom_call.1} parent=5 // pred_check_branch
      %3234 = sbr.rel (%p3232) target = $region60
    $region59: #{tpu_custom_call.1} parent=5 // pred_region
      %s3235 = ssub.s32 %s14, 2
      // Predicated region
      $region61: #{tpu_custom_call.1} parent=59 // pred_check
        %p3236 = pneg %p216
      $region62: #{tpu_custom_call.1} parent=59 // pred_check_branch
        %3238 = sbr.rel (%p3236) target = $region64
      $region63: #{tpu_custom_call.1} parent=59 // pred_region
        %s3239 = smul.u32 48, %s20
        %p3240 = scmp.lt.s32.totalorder %s3239, 95
        %s3241 = scalar_select %p3240, %s3239, 95
        %s3242 = smul.addr %s3241, 8
        %s3243 = scalar_lea.vmem %s8, %s3242
      $region64: #{tpu_custom_call.1} parent=59 // pred_fallthru
        _
    $region60: #{tpu_custom_call.1} parent=5 // pred_fallthru
      _
  $region6: #{tpu_custom_call.1} parent=0 // loop_footer
    %s18 = sadd.s32 1, %s14
  $region7: #{tpu_custom_call.1} parent=0 // loop_footer_branch
    %13 = sbr.rel target = $region3
  $region8: #{tpu_custom_call.1} parent=0 // loop_exit
    _

</llo_original>
